<compile_context>
chip_gen: v7x
topology: tpu7x:2x2x1
jax: 0.10.0
libtpu: 0.0.40
codegen_flags: <defaults>
</compile_context>

<pallas_src>
import functools

import jax
import jax.numpy as jnp
from jax import lax
from jax.experimental import pallas as pl
from jax.experimental.pallas import tpu as pltpu

BIG = 1e10          # distance sentinel for cross-batch / padded voxels
EXCLUDE = 3.0e38    # packed-key sentinel, larger than any real packed key
LANE = 128
SUB = 8


def _round_up(x, m):
    return (x + m - 1) // m * m


def _merge_sorted(a, b):
    """First len(a) order statistics of the union of two equal-length sorted
    (ascending) lists of (TP, 1) columns; branchless min/max network."""
    n = len(a)
    out = []
    for k in range(1, n + 1):
        cands = []
        for i in range(k + 1):
            j = k - i
            if i > n or j > n:
                continue
            if i == 0:
                cands.append(b[j - 1])
            elif j == 0:
                cands.append(a[i - 1])
            else:
                cands.append(jnp.maximum(a[i - 1], b[j - 1]))
        m = cands[0]
        for c in cands[1:]:
            m = jnp.minimum(m, c)
        out.append(m)
    return out


# ---------------------------------------------------------------------------
# V-chunked online top-`nsample` inverse-distance interpolation
# ---------------------------------------------------------------------------
def _interp_chunked(pc, vct_ref, vf_ref, *, nsample, low_bits, vt, n_chunks):
    """pc      : (TP, 4) f32 loaded tile, rows [bs, x, y, z]
       vct_ref : (4, V_pad) f32 VMEM ref, rows [bs; x; y; z] (all voxels, transposed)
       vf_ref  : (V_pad, C) bf16 VMEM ref (voxel features, C lane-dense)
       returns (TP, C) f32 = sum_j w_j * vf[neighbor_j]  (weights pre-normalized)."""
    TP = pc.shape[0]
    C = vf_ref.shape[1]
    low_mask = (1 << low_bits) - 1
    unroll = n_chunks <= 4

    pbs = pc[:, 0:1]
    px, py, pz = pc[:, 1:2], pc[:, 2:3], pc[:, 3:4]
    excl = jnp.float32(EXCLUDE)

    def chunk_keys(cstart):
        vc = vct_ref[:, pl.ds(cstart, vt)]                          # (4, vt)
        dx = px - vc[1:2, :]
        dy = py - vc[2:3, :]
        dz = pz - vc[3:4, :]
        d2 = dx * dx + dy * dy + dz * dz + 1e-12                    # positive normals
        d2 = jnp.where(pbs == vc[0:1, :], d2, jnp.float32(BIG))     # cross-batch masked
        col = cstart + lax.broadcasted_iota(jnp.int32, (TP, vt), 1)
        # pack (distance | global column) into one monotone sortable key
        key_i = (pltpu.bitcast(d2, jnp.int32) & ~low_mask) | col
        return pltpu.bitcast(key_i, jnp.float32)

    # ---- pass 1: carry the nsample best packed keys across V chunks ----
    def p1_body(c, best):
        cstart = pl.multiple_of(c * vt, vt)
        key = chunk_keys(cstart)
        picks = []
        for j in range(nsample):
            kmin = jnp.min(key, axis=-1, keepdims=True)             # one lane reduction
            picks.append(kmin)
            if j + 1 < nsample:                                     # last exclude skipped
                key = jnp.where(key == kmin, excl, key)             # keys unique per row
        return tuple(_merge_sorted(list(best), picks))

    best0 = tuple(jnp.full((TP, 1), EXCLUDE, jnp.float32) for _ in range(nsample))
    best = lax.fori_loop(0, n_chunks, p1_body, best0, unroll=unroll)

    # unpack neighbor columns + normalized inverse-distance weights, all (TP, 1)
    # TODO(synk): re-select the exact (untruncated) d2 here if bit-parity with
    # pointnet2 three_interpolate is required at very large V_pad.
    cols, recips = [], []
    for j in range(nsample):
        ki = pltpu.bitcast(best[j], jnp.int32)
        cols.append(ki & low_mask)
        dmin = pltpu.bitcast(ki & ~low_mask, jnp.float32)
        recips.append(pl.reciprocal(dmin + 1e-8, approx=True))      # EUP
    rsum = recips[0]
    for r in recips[1:]:
        rsum = rsum + r
    inv_sum = pl.reciprocal(rsum, approx=True)
    wn = [r * inv_sum for r in recips]

    # ---- pass 2: gather-by-matmul per chunk with pre-normalized weights ----
    # TODO(synk): a true 3-row vector gather of vf_ref would avoid the dense
    # onehot matmul, but gathers do not lower robustly for arbitrary V.
    def p2_body(c, acc):
        cstart = pl.multiple_of(c * vt, vt)
        col = cstart + lax.broadcasted_iota(jnp.int32, (TP, vt), 1)
        w = jnp.where(col == cols[0], wn[0], 0.0)
        for j in range(1, nsample):
            w = w + jnp.where(col == cols[j], wn[j], 0.0)
        return acc + jnp.dot(w.astype(jnp.bfloat16), vf_ref[pl.ds(cstart, vt), :],
                             preferred_element_type=jnp.float32)

    acc0 = jnp.zeros((TP, C), jnp.float32)
    return lax.fori_loop(0, n_chunks, p2_body, acc0, unroll=unroll)


# ---------------------------------------------------------------------------
# kernel bodies
# ---------------------------------------------------------------------------
def _fused_kernel(pc_ref, vct_ref, vf1_ref, xi_ref, b1_ref, w2_ref, wd_ref, bc_ref,
                  out_ref, *, nsample, low_bits, vt, n_chunks):
    # h = relu(weight @ (vfeat @ w1') + b1)   -- w1(+BN1) pre-folded into vf1
    h = _interp_chunked(pc_ref[...], vct_ref, vf1_ref, nsample=nsample,
                        low_bits=low_bits, vt=vt, n_chunks=n_chunks)      # (TP, OUT) f32
    h = jnp.maximum(h + b1_ref[...], 0.0)
    # second Linear(+BN2) and downsample Linear(+BNd) as two lane-dense dots
    y = (jnp.dot(h.astype(jnp.bfloat16), w2_ref[...], preferred_element_type=jnp.float32)
         + jnp.dot(xi_ref[...], wd_ref[...], preferred_element_type=jnp.float32)
         + bc_ref[...])
    out_ref[...] = jnp.maximum(y, 0.0).astype(out_ref.dtype)              # bf16, lane-dense


def _interp_only_kernel(pc_ref, vct_ref, vf_ref, out_ref,
                        *, nsample, low_bits, vt, n_chunks):
    out_ref[...] = _interp_chunked(pc_ref[...], vct_ref, vf_ref, nsample=nsample,
                                   low_bits=low_bits, vt=vt, n_chunks=n_chunks
                                   ).astype(out_ref.dtype)


# ---------------------------------------------------------------------------
# Module wrapper
# ---------------------------------------------------------------------------
def _fold_bn(key, c, eps=1e-3):
    k1, k2, k3, k4 = jax.random.split(key, 4)
    gamma = jax.random.uniform(k1, (c,), jnp.float32, 0.5, 1.5)
    beta = 0.1 * jax.random.normal(k2, (c,), jnp.float32)
    running_mean = 0.1 * jax.random.normal(k3, (c,), jnp.float32)
    running_var = jax.random.uniform(k4, (c,), jnp.float32, 0.5, 1.5)
    scale = gamma / jnp.sqrt(running_var + eps)
    bias = beta - running_mean * scale
    return scale, bias


class LateralBottomResBlockPallas:
    # point_tile=128 is the safe default (v5e MXU width / v7x VMEM headroom);
    # raise to 256 on v6e (128 MiB VMEM, 256-wide MXU).  voxel_tile bounds the
    # (TP, VT) in-kernel temporaries.
    def __init__(self, voxel_size, point_cloud_range, nsample,
                 lateral_downsample_times, lateral_channels,
                 bottom_downsample_times, bottom_channels, out_channels, key,
                 point_tile=128, voxel_tile=2048):
        self.voxel_size = jnp.asarray(voxel_size, jnp.float32)
        self.point_cloud_range = jnp.asarray(point_cloud_range, jnp.float32)
        self.nsample = nsample
        self.lateral_downsample_times = lateral_downsample_times
        self.bottom_downsample_times = bottom_downsample_times
        self.point_tile = point_tile
        self.voxel_tile = voxel_tile
        self.has_net = bottom_channels != -1
        if self.has_net:
            ks = jax.random.split(key, 6)
            # net: Linear(lateral,out) -> BN -> ReLU -> Linear(out,out) -> BN
            w1 = jax.random.normal(ks[0], (lateral_channels, out_channels),
                                   jnp.float32) / jnp.sqrt(float(lateral_channels))
            s1, b1 = _fold_bn(ks[1], out_channels)
            w2 = jax.random.normal(ks[2], (out_channels, out_channels),
                                   jnp.float32) / jnp.sqrt(float(out_channels))
            s2, b2 = _fold_bn(ks[3], out_channels)
            # downsample: Linear(bottom,out) -> BN
            wd = jax.random.normal(ks[4], (bottom_channels, out_channels),
                                   jnp.float32) / jnp.sqrt(float(bottom_channels))
            sd, bd = _fold_bn(ks[5], out_channels)

            out_pad = _round_up(out_channels, LANE)
            padc = out_pad - out_channels
            self.w1f = jnp.pad(w1 * s1[None, :], ((0, 0), (0, padc)))     # f32 (Cl, OUT)
            self.b1f = jnp.pad(b1, (0, padc)).reshape(1, out_pad)          # f32
            self.w2f = jnp.pad(w2 * s2[None, :],
                               ((0, padc), (0, padc))).astype(jnp.bfloat16)
            self.wdf = jnp.pad(wd * sd[None, :], ((0, 0), (0, padc))).astype(jnp.bfloat16)
            self.bcf = jnp.pad(b2 + bd, (0, padc)).reshape(1, out_pad)     # f32
            self.out_channels = out_channels
            self.out_pad = out_pad
            self.bottom_channels = bottom_channels

    def _voxel_centers(self, voxel_coords_zyx):
        # common_utils.get_voxel_centers: (z, y, x) indices -> xyz centers
        xyz_idx = voxel_coords_zyx[:, ::-1].astype(jnp.float32)
        vs = self.voxel_size * self.lateral_downsample_times
        return (xyz_idx + 0.5) * vs + self.point_cloud_range[0:3]

    @staticmethod
    def _vmem_limit(tp, vt, v_pad, cb, cout):
        try:
            cap = int(pltpu.get_tpu_info().vmem_capacity_bytes)
        except Exception:                       # conservative fallback (v7x = 64 MiB)
            cap = 64 * 1024 * 1024
        cb = max(cb, 1)
        const = 4 * 4 * v_pad + 2 * v_pad * cout + 2 * cout * cout \
            + 2 * cb * cout + 2 * 4 * cout                    # single-buffered operands
        tile_io = 2 * tp * (4 * 4 + 2 * cb + 2 * cout)        # double-buffered tile IO
        temps = 8 * 4 * tp * vt + 4 * tp * cout               # live (TP, VT) f32 temps
        need = const + tile_io + temps
        return int(min(max(2 * need, 32 * 1024 * 1024), int(0.85 * cap)))

    def forward(self, lateral_voxel_feats, lateral_voxel_indices,
                bottom_point_feats, bottom_point_coords, batch_size):
        del batch_size  # batching handled by in-kernel batch-index masking
        # TODO(synk): at production batch sizes pass per-batch voxel offsets via
        # PrefetchScalarGridSpec and bound the chunk loop to each tile's own
        # batch slice instead of masking cross-batch distances.
        P = bottom_point_coords.shape[0]
        V, Cl = lateral_voxel_feats.shape

        TP = min(self.point_tile, _round_up(P, SUB))
        P_pad = _round_up(P, TP)
        VT = min(_round_up(V, LANE), self.voxel_tile)
        V_pad = _round_up(V, VT)
        n_chunks = V_pad // VT
        low_bits = max(1, int(V_pad - 1).bit_length())
        # TODO(synk): beyond V_pad ~ 2^20 carry exact distances alongside the
        # packed key (column bits start eating the useful mantissa).

        # points: packed [bs, x, y, z], tile-padded with bs = -1 (matches nothing)
        pc = bottom_point_coords.astype(jnp.float32)
        pad_pc = jnp.concatenate(
            [jnp.full((P_pad - P, 1), -1.0, jnp.float32),
             jnp.zeros((P_pad - P, 3), jnp.float32)], axis=1)
        pc = jnp.concatenate([pc, pad_pc], axis=0)

        # voxels: packed [bs, x, y, z], padded with bs = -2, transposed to (4, V_pad)
        vbs = lateral_voxel_indices[:, 0:1].astype(jnp.float32)
        vxyz = self._voxel_centers(lateral_voxel_indices[:, 1:4])
        vc = jnp.concatenate([vbs, vxyz], axis=1)
        pad_vc = jnp.concatenate(
            [jnp.full((V_pad - V, 1), -2.0, jnp.float32),
             jnp.zeros((V_pad - V, 3), jnp.float32)], axis=1)
        vct = jnp.concatenate([vc, pad_vc], axis=0).T                     # (4, V_pad)

        grid = (P_pad // TP,)

        def _const_spec(shape):
            # grid-invariant operand: fetched once, single-buffered
            return pl.BlockSpec(shape, lambda i: (0, 0), pipeline_mode=pl.Buffered(1))

        if self.has_net and bottom_point_feats is not None:
            Cb = self.bottom_channels
            out_pad = self.out_pad
            # fold Linear1(+BN1) into the gather matmul (done once per call)
            vf1 = jnp.dot(lateral_voxel_feats.astype(jnp.float32), self.w1f)
            vf1 = jnp.concatenate(
                [vf1.astype(jnp.bfloat16),
                 jnp.zeros((V_pad - V, out_pad), jnp.bfloat16)], axis=0)   # (V_pad, OUT)
            xi = jnp.concatenate(
                [bottom_point_feats.astype(jnp.bfloat16),
                 jnp.zeros((P_pad - P, Cb), jnp.bfloat16)], axis=0)

            out = pl.pallas_call(
                functools.partial(_fused_kernel, nsample=self.nsample,
                                  low_bits=low_bits, vt=VT, n_chunks=n_chunks),
                out_shape=jax.ShapeDtypeStruct((P_pad, out_pad), jnp.bfloat16),
                grid=grid,
                in_specs=[
                    pl.BlockSpec((TP, 4), lambda i: (i, 0)),       # point coords
                    _const_spec((4, V_pad)),                       # voxel coords^T
                    _const_spec((V_pad, out_pad)),                 # vfeat @ w1'
                    pl.BlockSpec((TP, Cb), lambda i: (i, 0)),      # identity feats (bf16)
                    _const_spec((1, out_pad)),                     # b1 (BN1 folded)
                    _const_spec((out_pad, out_pad)),               # w2' (BN2 folded)
                    _const_spec((Cb, out_pad)),                    # wd' (BNd folded)
                    _const_spec((1, out_pad)),                     # b2 + bd
                ],
                out_specs=pl.BlockSpec((TP, out_pad), lambda i: (i, 0)),
                compiler_params=pltpu.CompilerParams(
                    dimension_semantics=("parallel",),
                    vmem_limit_bytes=self._vmem_limit(TP, VT, V_pad, Cb, out_pad)),
            )(pc, vct, vf1, xi, self.b1f, self.w2f, self.wdf, self.bcf)
            # TODO(synk): for very small out_channels, pack several points per
            # lane-dense output row instead of slicing away padded lanes.
            x_out = out[:P, :self.out_channels].astype(jnp.float32)
        else:
            Cl_pad = _round_up(Cl, LANE)
            vfp = jnp.concatenate(
                [jnp.pad(lateral_voxel_feats.astype(jnp.bfloat16),
                         ((0, 0), (0, Cl_pad - Cl))),
                 jnp.zeros((V_pad - V, Cl_pad), jnp.bfloat16)], axis=0)
            out = pl.pallas_call(
                functools.partial(_interp_only_kernel, nsample=self.nsample,
                                  low_bits=low_bits, vt=VT, n_chunks=n_chunks),
                out_shape=jax.ShapeDtypeStruct((P_pad, Cl_pad), jnp.bfloat16),
                grid=grid,
                in_specs=[
                    pl.BlockSpec((TP, 4), lambda i: (i, 0)),
                    _const_spec((4, V_pad)),
                    _const_spec((V_pad, Cl_pad)),
                ],
                out_specs=pl.BlockSpec((TP, Cl_pad), lambda i: (i, 0)),
                compiler_params=pltpu.CompilerParams(
                    dimension_semantics=("parallel",),
                    vmem_limit_bytes=self._vmem_limit(TP, VT, V_pad, 0, Cl_pad)),
            )(pc, vct, vfp)
            x_out = out[:P, :Cl].astype(jnp.float32)

        x_out_coords = bottom_point_coords.astype(jnp.float32)
        return x_out_coords, x_out


# ---------------------------------------------------------------------------
if __name__ == "__main__":
    key = jax.random.PRNGKey(0)
    k_param, k_vidx, k_vfeat, k_pxyz, k_pfeat = jax.random.split(key, 5)

    batch_size = 2
    V_per, P_per = 128, 300
    lateral_channels, bottom_channels, out_channels = 8, 8, 16
    nsample = 3
    voxel_size = (0.1, 0.1, 0.1)
    point_cloud_range = (0.0, -2.0, -1.0, 4.0, 2.0, 3.0)

    block = LateralBottomResBlockPallas(
        voxel_size, point_cloud_range, nsample,
        lateral_downsample_times=2, lateral_channels=lateral_channels,
        bottom_downsample_times=1, bottom_channels=bottom_channels,
        out_channels=out_channels, key=k_param, point_tile=128, voxel_tile=2048)

    # lateral sparse voxels: indices (V, 4) = [bs, idxz, idxy, idxx] (batch-sorted)
    V = batch_size * V_per
    bs_col_v = jnp.repeat(jnp.arange(batch_size, dtype=jnp.int32), V_per)[:, None]
    zyx = jax.random.randint(k_vidx, (V, 3), 0, 16, dtype=jnp.int32)
    lateral_voxel_indices = jnp.concatenate([bs_col_v, zyx], axis=1)
    lateral_voxel_feats = jax.random.normal(k_vfeat, (V, lateral_channels), jnp.float32)

    # bottom points: coords (P, 4) = [bs, x, y, z] (batch-sorted)
    P = batch_size * P_per
    bs_col_p = jnp.repeat(jnp.arange(batch_size, dtype=jnp.int32), P_per)[:, None]
    lo = jnp.asarray(point_cloud_range[0:3], jnp.float32)
    hi = jnp.asarray(point_cloud_range[3:6], jnp.float32)
    pxyz = lo + (hi - lo) * jax.random.uniform(k_pxyz, (P, 3), jnp.float32)
    bottom_point_coords = jnp.concatenate([bs_col_p.astype(jnp.float32), pxyz], axis=1)
    bottom_point_feats = jax.random.normal(k_pfeat, (P, bottom_channels), jnp.float32)

    coords_out, feats_out = block.forward(
        lateral_voxel_feats, lateral_voxel_indices,
        bottom_point_feats, bottom_point_coords, batch_size)

    jax.block_until_ready((coords_out, feats_out))
    assert coords_out.shape == (P, 4)
    assert feats_out.shape == (P, out_channels)
    assert bool(jnp.all(jnp.isfinite(feats_out)))
    print("KERNEL_OK")
</pallas_src>

<mosaic_0001>
module attributes {stable_mosaic.version = 11 : i64} {
  func.func @_fused_kernel(%arg0: i32, %arg1: memref<128x4xf32, #tpu.memory_space<vmem>>, %arg2: memref<4x256xf32, #tpu.memory_space<vmem>>, %arg3: memref<256x128xbf16, #tpu.memory_space<vmem>>, %arg4: memref<128x8xbf16, #tpu.memory_space<vmem>>, %arg5: memref<1x128xf32, #tpu.memory_space<vmem>>, %arg6: memref<128x128xbf16, #tpu.memory_space<vmem>>, %arg7: memref<8x128xbf16, #tpu.memory_space<vmem>>, %arg8: memref<1x128xf32, #tpu.memory_space<vmem>>, %arg9: memref<128x128xbf16, #tpu.memory_space<vmem>>) attributes {dimension_semantics = [#tpu.dimension_semantics<parallel>], iteration_bounds = array<i64: 5>, scalar_prefetch = 0 : i64, scratch_operands = 0 : i64, tpu.core_type = #tpu.core_type<tc>, window_params = [{transform_indices = @transform_0, window_bounds = array<i64: 128, 4>}, {pipeline_mode = #tpu.pipeline_mode<synchronous>, transform_indices = @transform_1, window_bounds = array<i64: 4, 256>}, {pipeline_mode = #tpu.pipeline_mode<synchronous>, transform_indices = @transform_2, window_bounds = array<i64: 256, 128>}, {transform_indices = @transform_3, window_bounds = array<i64: 128, 8>}, {pipeline_mode = #tpu.pipeline_mode<synchronous>, transform_indices = @transform_4, window_bounds = array<i64: 1, 128>}, {pipeline_mode = #tpu.pipeline_mode<synchronous>, transform_indices = @transform_5, window_bounds = array<i64: 128, 128>}, {pipeline_mode = #tpu.pipeline_mode<synchronous>, transform_indices = @transform_6, window_bounds = array<i64: 8, 128>}, {pipeline_mode = #tpu.pipeline_mode<synchronous>, transform_indices = @transform_7, window_bounds = array<i64: 1, 128>}, {transform_indices = @transform_8, window_bounds = array<i64: 128, 128>}]} {
    %c0 = arith.constant 0 : index
    %c0_0 = arith.constant 0 : index
    %0 = vector.load %arg1[%c0, %c0_0] : memref<128x4xf32, #tpu.memory_space<vmem>>, vector<128x4xf32>
    %1 = vector.extract_strided_slice %0 {offsets = [0, 0], sizes = [128, 1], strides = [1, 1]} : vector<128x4xf32> to vector<128x1xf32>
    %2 = vector.extract_strided_slice %0 {offsets = [0, 1], sizes = [128, 1], strides = [1, 1]} : vector<128x4xf32> to vector<128x1xf32>
    %3 = vector.extract_strided_slice %0 {offsets = [0, 2], sizes = [128, 1], strides = [1, 1]} : vector<128x4xf32> to vector<128x1xf32>
    %4 = vector.extract_strided_slice %0 {offsets = [0, 3], sizes = [128, 1], strides = [1, 1]} : vector<128x4xf32> to vector<128x1xf32>
    %cst = arith.constant 3.000000e+38 : f32
    %5 = vector.broadcast %cst : f32 to vector<128x1xf32>
    %cst_1 = arith.constant 3.000000e+38 : f32
    %6 = vector.broadcast %cst_1 : f32 to vector<128x1xf32>
    %cst_2 = arith.constant 3.000000e+38 : f32
    %7 = vector.broadcast %cst_2 : f32 to vector<128x1xf32>
    %cst_3 = arith.constant 3.000000e+38 : f32
    %c0_i32 = arith.constant 0 : i32
    %c256_i32 = arith.constant 256 : i32
    %8 = arith.muli %c0_i32, %c256_i32 : i32
    %9 = tpu.assume_multiple %8, 256 : i32
    %c0_4 = arith.constant 0 : index
    %10 = arith.index_cast %9 : i32 to index
    %11 = vector.load %arg2[%c0_4, %10] : memref<4x256xf32, #tpu.memory_space<vmem>>, vector<4x256xf32>
    %12 = vector.extract_strided_slice %11 {offsets = [1, 0], sizes = [1, 256], strides = [1, 1]} : vector<4x256xf32> to vector<1x256xf32>
    %13 = vector.broadcast %2 : vector<128x1xf32> to vector<128x256xf32>
    %14 = vector.broadcast %12 : vector<1x256xf32> to vector<128x256xf32>
    %15 = arith.subf %13, %14 : vector<128x256xf32>
    %16 = vector.extract_strided_slice %11 {offsets = [2, 0], sizes = [1, 256], strides = [1, 1]} : vector<4x256xf32> to vector<1x256xf32>
    %17 = vector.broadcast %3 : vector<128x1xf32> to vector<128x256xf32>
    %18 = vector.broadcast %16 : vector<1x256xf32> to vector<128x256xf32>
    %19 = arith.subf %17, %18 : vector<128x256xf32>
    %20 = vector.extract_strided_slice %11 {offsets = [3, 0], sizes = [1, 256], strides = [1, 1]} : vector<4x256xf32> to vector<1x256xf32>
    %21 = vector.broadcast %4 : vector<128x1xf32> to vector<128x256xf32>
    %22 = vector.broadcast %20 : vector<1x256xf32> to vector<128x256xf32>
    %23 = arith.subf %21, %22 : vector<128x256xf32>
    %24 = arith.mulf %15, %15 : vector<128x256xf32>
    %25 = arith.mulf %19, %19 : vector<128x256xf32>
    %26 = arith.addf %24, %25 : vector<128x256xf32>
    %27 = arith.mulf %23, %23 : vector<128x256xf32>
    %28 = arith.addf %26, %27 : vector<128x256xf32>
    %cst_5 = arith.constant 9.99999996E-13 : f32
    %29 = vector.broadcast %cst_5 : f32 to vector<128x256xf32>
    %30 = arith.addf %28, %29 : vector<128x256xf32>
    %31 = vector.extract_strided_slice %11 {offsets = [0, 0], sizes = [1, 256], strides = [1, 1]} : vector<4x256xf32> to vector<1x256xf32>
    %32 = vector.broadcast %1 : vector<128x1xf32> to vector<128x256xf32>
    %33 = vector.broadcast %31 : vector<1x256xf32> to vector<128x256xf32>
    %34 = arith.cmpf oeq, %32, %33 : vector<128x256xf32>
    %cst_6 = arith.constant 1.000000e+10 : f32
    %35 = vector.broadcast %cst_6 : f32 to vector<128x256xf32>
    %36 = arith.select %34, %30, %35 : vector<128x256xi1>, vector<128x256xf32>
    %37 = tpu.iota {dimensions = array<i32: 1>} : vector<128x256xi32>
    %38 = vector.broadcast %9 : i32 to vector<128x256xi32>
    %39 = arith.addi %38, %37 : vector<128x256xi32>
    %40 = tpu.bitcast %36 : vector<128x256xf32> -> vector<128x256xi32>
    %c-256_i32 = arith.constant -256 : i32
    %41 = vector.broadcast %c-256_i32 : i32 to vector<128x256xi32>
    %42 = arith.andi %40, %41 : vector<128x256xi32>
    %43 = arith.ori %42, %39 : vector<128x256xi32>
    %44 = tpu.bitcast %43 : vector<128x256xi32> -> vector<128x256xf32>
    %cst_7 = arith.constant dense<0x7F800000> : vector<128xf32>
    %45 = vector.multi_reduction <minimumf>, %44, %cst_7 [1] : vector<128x256xf32> to vector<128xf32>
    %46 = vector.shape_cast %45 : vector<128xf32> to vector<128x1xf32>
    %47 = vector.broadcast %46 : vector<128x1xf32> to vector<128x256xf32>
    %48 = arith.cmpf oeq, %44, %47 : vector<128x256xf32>
    %49 = vector.broadcast %cst_3 : f32 to vector<128x256xf32>
    %50 = arith.select %48, %49, %44 : vector<128x256xi1>, vector<128x256xf32>
    %cst_8 = arith.constant dense<0x7F800000> : vector<128xf32>
    %51 = vector.multi_reduction <minimumf>, %50, %cst_8 [1] : vector<128x256xf32> to vector<128xf32>
    %52 = vector.shape_cast %51 : vector<128xf32> to vector<128x1xf32>
    %53 = vector.broadcast %52 : vector<128x1xf32> to vector<128x256xf32>
    %54 = arith.cmpf oeq, %50, %53 : vector<128x256xf32>
    %55 = vector.broadcast %cst_3 : f32 to vector<128x256xf32>
    %56 = arith.select %54, %55, %50 : vector<128x256xi1>, vector<128x256xf32>
    %cst_9 = arith.constant dense<0x7F800000> : vector<128xf32>
    %57 = vector.multi_reduction <minimumf>, %56, %cst_9 [1] : vector<128x256xf32> to vector<128xf32>
    %58 = vector.shape_cast %57 : vector<128xf32> to vector<128x1xf32>
    %59 = arith.minimumf %46, %5 : vector<128x1xf32>
    %60 = arith.maximumf %5, %46 : vector<128x1xf32>
    %61 = arith.minimumf %52, %60 : vector<128x1xf32>
    %62 = arith.minimumf %61, %6 : vector<128x1xf32>
    %63 = arith.maximumf %5, %52 : vector<128x1xf32>
    %64 = arith.maximumf %6, %46 : vector<128x1xf32>
    %65 = arith.minimumf %58, %63 : vector<128x1xf32>
    %66 = arith.minimumf %65, %64 : vector<128x1xf32>
    %67 = arith.minimumf %66, %7 : vector<128x1xf32>
    %c1_i32 = arith.constant 1 : i32
    %68 = tpu.bitcast %59 : vector<128x1xf32> -> vector<128x1xi32>
    %c255_i32 = arith.constant 255 : i32
    %69 = vector.broadcast %c255_i32 : i32 to vector<128x1xi32>
    %70 = arith.andi %68, %69 : vector<128x1xi32>
    %c-256_i32_10 = arith.constant -256 : i32
    %71 = vector.broadcast %c-256_i32_10 : i32 to vector<128x1xi32>
    %72 = arith.andi %68, %71 : vector<128x1xi32>
    %73 = tpu.bitcast %72 : vector<128x1xi32> -> vector<128x1xf32>
    %cst_11 = arith.constant 9.99999993E-9 : f32
    %74 = vector.broadcast %cst_11 : f32 to vector<128x1xf32>
    %75 = arith.addf %73, %74 : vector<128x1xf32>
    %76 = tpu.reciprocal %75 {approx = true} : vector<128x1xf32> -> vector<128x1xf32>
    %77 = tpu.bitcast %62 : vector<128x1xf32> -> vector<128x1xi32>
    %c255_i32_12 = arith.constant 255 : i32
    %78 = vector.broadcast %c255_i32_12 : i32 to vector<128x1xi32>
    %79 = arith.andi %77, %78 : vector<128x1xi32>
    %c-256_i32_13 = arith.constant -256 : i32
    %80 = vector.broadcast %c-256_i32_13 : i32 to vector<128x1xi32>
    %81 = arith.andi %77, %80 : vector<128x1xi32>
    %82 = tpu.bitcast %81 : vector<128x1xi32> -> vector<128x1xf32>
    %cst_14 = arith.constant 9.99999993E-9 : f32
    %83 = vector.broadcast %cst_14 : f32 to vector<128x1xf32>
    %84 = arith.addf %82, %83 : vector<128x1xf32>
    %85 = tpu.reciprocal %84 {approx = true} : vector<128x1xf32> -> vector<128x1xf32>
    %86 = tpu.bitcast %67 : vector<128x1xf32> -> vector<128x1xi32>
    %c255_i32_15 = arith.constant 255 : i32
    %87 = vector.broadcast %c255_i32_15 : i32 to vector<128x1xi32>
    %88 = arith.andi %86, %87 : vector<128x1xi32>
    %c-256_i32_16 = arith.constant -256 : i32
    %89 = vector.broadcast %c-256_i32_16 : i32 to vector<128x1xi32>
    %90 = arith.andi %86, %89 : vector<128x1xi32>
    %91 = tpu.bitcast %90 : vector<128x1xi32> -> vector<128x1xf32>
    %cst_17 = arith.constant 9.99999993E-9 : f32
    %92 = vector.broadcast %cst_17 : f32 to vector<128x1xf32>
    %93 = arith.addf %91, %92 : vector<128x1xf32>
    %94 = tpu.reciprocal %93 {approx = true} : vector<128x1xf32> -> vector<128x1xf32>
    %95 = arith.addf %76, %85 : vector<128x1xf32>
    %96 = arith.addf %95, %94 : vector<128x1xf32>
    %97 = tpu.reciprocal %96 {approx = true} : vector<128x1xf32> -> vector<128x1xf32>
    %98 = arith.mulf %76, %97 : vector<128x1xf32>
    %99 = arith.mulf %85, %97 : vector<128x1xf32>
    %100 = arith.mulf %94, %97 : vector<128x1xf32>
    %cst_18 = arith.constant 0.000000e+00 : f32
    %101 = vector.broadcast %cst_18 : f32 to vector<128x128xf32>
    %c0_i32_19 = arith.constant 0 : i32
    %c256_i32_20 = arith.constant 256 : i32
    %102 = arith.muli %c0_i32_19, %c256_i32_20 : i32
    %103 = tpu.assume_multiple %102, 256 : i32
    %104 = tpu.iota {dimensions = array<i32: 1>} : vector<128x256xi32>
    %105 = vector.broadcast %103 : i32 to vector<128x256xi32>
    %106 = arith.addi %105, %104 : vector<128x256xi32>
    %107 = vector.broadcast %70 : vector<128x1xi32> to vector<128x256xi32>
    %108 = arith.cmpi eq, %106, %107 : vector<128x256xi32>
    %cst_21 = arith.constant 0.000000e+00 : f32
    %109 = vector.shape_cast %98 : vector<128x1xf32> to vector<128x1xf32>
    %110 = vector.broadcast %109 : vector<128x1xf32> to vector<128x256xf32>
    %111 = vector.broadcast %cst_21 : f32 to vector<128x256xf32>
    %112 = arith.select %108, %110, %111 : vector<128x256xi1>, vector<128x256xf32>
    %113 = vector.broadcast %79 : vector<128x1xi32> to vector<128x256xi32>
    %114 = arith.cmpi eq, %106, %113 : vector<128x256xi32>
    %cst_22 = arith.constant 0.000000e+00 : f32
    %115 = vector.shape_cast %99 : vector<128x1xf32> to vector<128x1xf32>
    %116 = vector.broadcast %115 : vector<128x1xf32> to vector<128x256xf32>
    %117 = vector.broadcast %cst_22 : f32 to vector<128x256xf32>
    %118 = arith.select %114, %116, %117 : vector<128x256xi1>, vector<128x256xf32>
    %119 = arith.addf %112, %118 : vector<128x256xf32>
    %120 = vector.broadcast %88 : vector<128x1xi32> to vector<128x256xi32>
    %121 = arith.cmpi eq, %106, %120 : vector<128x256xi32>
    %cst_23 = arith.constant 0.000000e+00 : f32
    %122 = vector.shape_cast %100 : vector<128x1xf32> to vector<128x1xf32>
    %123 = vector.broadcast %122 : vector<128x1xf32> to vector<128x256xf32>
    %124 = vector.broadcast %cst_23 : f32 to vector<128x256xf32>
    %125 = arith.select %121, %123, %124 : vector<128x256xi1>, vector<128x256xf32>
    %126 = arith.addf %119, %125 : vector<128x256xf32>
    %127 = arith.truncf %126 : vector<128x256xf32> to vector<128x256xbf16>
    %128 = arith.index_cast %103 : i32 to index
    %c0_24 = arith.constant 0 : index
    %129 = vector.load %arg3[%128, %c0_24] : memref<256x128xbf16, #tpu.memory_space<vmem>>, vector<256x128xbf16>
    %cst_25 = arith.constant dense<0.000000e+00> : vector<128x128xf32>
    %130 = tpu.matmul %127, %129, %cst_25 {dimension_numbers = #tpu.dot_dimension_numbers<[1], [0], [0], [1], [0, 0, 1, 1], [], []>} : vector<128x256xbf16>, vector<256x128xbf16>, vector<128x128xf32> -> vector<128x128xf32>
    %131 = arith.addf %101, %130 : vector<128x128xf32>
    %c1_i32_26 = arith.constant 1 : i32
    %c0_27 = arith.constant 0 : index
    %c0_28 = arith.constant 0 : index
    %132 = vector.load %arg5[%c0_27, %c0_28] : memref<1x128xf32, #tpu.memory_space<vmem>>, vector<1x128xf32>
    %133 = vector.broadcast %132 : vector<1x128xf32> to vector<128x128xf32>
    %134 = arith.addf %131, %133 : vector<128x128xf32>
    %cst_29 = arith.constant 0.000000e+00 : f32
    %135 = vector.broadcast %cst_29 : f32 to vector<128x128xf32>
    %136 = arith.maximumf %134, %135 : vector<128x128xf32>
    %137 = arith.truncf %136 : vector<128x128xf32> to vector<128x128xbf16>
    %c0_30 = arith.constant 0 : index
    %c0_31 = arith.constant 0 : index
    %138 = vector.load %arg6[%c0_30, %c0_31] : memref<128x128xbf16, #tpu.memory_space<vmem>>, vector<128x128xbf16>
    %cst_32 = arith.constant dense<0.000000e+00> : vector<128x128xf32>
    %139 = tpu.matmul %137, %138, %cst_32 {dimension_numbers = #tpu.dot_dimension_numbers<[1], [0], [0], [1], [0, 0, 1, 1], [], []>} : vector<128x128xbf16>, vector<128x128xbf16>, vector<128x128xf32> -> vector<128x128xf32>
    %c0_33 = arith.constant 0 : index
    %c0_34 = arith.constant 0 : index
    %140 = vector.load %arg4[%c0_33, %c0_34] : memref<128x8xbf16, #tpu.memory_space<vmem>>, vector<128x8xbf16>
    %c0_35 = arith.constant 0 : index
    %c0_36 = arith.constant 0 : index
    %141 = vector.load %arg7[%c0_35, %c0_36] : memref<8x128xbf16, #tpu.memory_space<vmem>>, vector<8x128xbf16>
    %cst_37 = arith.constant dense<0.000000e+00> : vector<128x128xf32>
    %142 = tpu.matmul %140, %141, %cst_37 {dimension_numbers = #tpu.dot_dimension_numbers<[1], [0], [0], [1], [0, 0, 1, 1], [], []>} : vector<128x8xbf16>, vector<8x128xbf16>, vector<128x128xf32> -> vector<128x128xf32>
    %143 = arith.addf %139, %142 : vector<128x128xf32>
    %c0_38 = arith.constant 0 : index
    %c0_39 = arith.constant 0 : index
    %144 = vector.load %arg8[%c0_38, %c0_39] : memref<1x128xf32, #tpu.memory_space<vmem>>, vector<1x128xf32>
    %145 = vector.broadcast %144 : vector<1x128xf32> to vector<128x128xf32>
    %146 = arith.addf %143, %145 : vector<128x128xf32>
    %cst_40 = arith.constant 0.000000e+00 : f32
    %147 = vector.broadcast %cst_40 : f32 to vector<128x128xf32>
    %148 = arith.maximumf %146, %147 : vector<128x128xf32>
    %149 = arith.truncf %148 : vector<128x128xf32> to vector<128x128xbf16>
    %c0_41 = arith.constant 0 : index
    %c0_42 = arith.constant 0 : index
    %150 = vector.load %arg9[%c0_41, %c0_42] : memref<128x128xbf16, #tpu.memory_space<vmem>>, vector<128x128xbf16>
    tpu.vector_store %arg9[%c0_41, %c0_42], %149 {strides = array<i32>} : memref<128x128xbf16, #tpu.memory_space<vmem>>, vector<128x128xbf16>,
    return
  }
  func.func @transform_0(%arg0: i32) -> (i32, i32) {
    %c0_i32 = arith.constant 0 : i32
    %c0_i32_0 = arith.constant 0 : i32
    return %arg0, %c0_i32 : i32, i32
  }
  func.func @transform_1(%arg0: i32) -> (i32, i32) {
    %c0_i32 = arith.constant 0 : i32
    %c0_i32_0 = arith.constant 0 : i32
    %c0_i32_1 = arith.constant 0 : i32
    return %c0_i32, %c0_i32_0 : i32, i32
  }
  func.func @transform_2(%arg0: i32) -> (i32, i32) {
    %c0_i32 = arith.constant 0 : i32
    %c0_i32_0 = arith.constant 0 : i32
    %c0_i32_1 = arith.constant 0 : i32
    return %c0_i32, %c0_i32_0 : i32, i32
  }
  func.func @transform_3(%arg0: i32) -> (i32, i32) {
    %c0_i32 = arith.constant 0 : i32
    %c0_i32_0 = arith.constant 0 : i32
    return %arg0, %c0_i32 : i32, i32
  }
  func.func @transform_4(%arg0: i32) -> (i32, i32) {
    %c0_i32 = arith.constant 0 : i32
    %c0_i32_0 = arith.constant 0 : i32
    %c0_i32_1 = arith.constant 0 : i32
    return %c0_i32, %c0_i32_0 : i32, i32
  }
  func.func @transform_5(%arg0: i32) -> (i32, i32) {
    %c0_i32 = arith.constant 0 : i32
    %c0_i32_0 = arith.constant 0 : i32
    %c0_i32_1 = arith.constant 0 : i32
    return %c0_i32, %c0_i32_0 : i32, i32
  }
  func.func @transform_6(%arg0: i32) -> (i32, i32) {
    %c0_i32 = arith.constant 0 : i32
    %c0_i32_0 = arith.constant 0 : i32
    %c0_i32_1 = arith.constant 0 : i32
    return %c0_i32, %c0_i32_0 : i32, i32
  }
  func.func @transform_7(%arg0: i32) -> (i32, i32) {
    %c0_i32 = arith.constant 0 : i32
    %c0_i32_0 = arith.constant 0 : i32
    %c0_i32_1 = arith.constant 0 : i32
    return %c0_i32, %c0_i32_0 : i32, i32
  }
  func.func @transform_8(%arg0: i32) -> (i32, i32) {
    %c0_i32 = arith.constant 0 : i32
    %c0_i32_0 = arith.constant 0 : i32
    return %arg0, %c0_i32 : i32, i32
  }
}

</mosaic_0001>

<llo_original>
// kernel: tpu_custom_call.1
$region0: #{tpu_custom_call.1}
  #allocation0 [shape = 'u32[]', space=smem, size = 0x4, offset = 0x4, fixed_abs, tag = 'smem constant byte address 0x4 - core index']
  #allocation1 [shape = 'u32[144,128]{1,0:T(1,128)}', space=vmem, size = 0x12000, scoped, tag = 'internal scratch']
  %s0 = inlined_call_operand.vmem [shape: f32[640,4], index: 0, kind: input, shape index: {}]
  %s1 = inlined_call_operand.vmem [shape: f32[4,256], index: 1, kind: input, shape index: {}]
  %s2 = inlined_call_operand.vmem [shape: bf16[256,128], index: 2, kind: input, shape index: {}]
  %s3 = inlined_call_operand.vmem [shape: bf16[640,8], index: 3, kind: input, shape index: {}]
  %s4 = inlined_call_operand.vmem [shape: f32[1,128], index: 4, kind: input, shape index: {}]
  %s5 = inlined_call_operand.vmem [shape: bf16[128,128], index: 5, kind: input, shape index: {}]
  %s6 = inlined_call_operand.vmem [shape: bf16[8,128], index: 6, kind: input, shape index: {}]
  %s7 = inlined_call_operand.vmem [shape: f32[1,128], index: 7, kind: input, shape index: {}]
  %s8 = inlined_call_operand.hbm [shape: bf16[640,128], index: 8, kind: output, shape index: {}]
  %s9 = sld [smem:[#allocation0]]
  $region65: #{tpu_custom_call.1} parent=0
    _
  %s11 = ssub.s32 1, %s9
  %s12 = scalar_select 0, %s11, %s9
  $region1: #{tpu_custom_call.1} parent=0
    #allocation2 [shape = 'u8[65536]{0}', space=vmem, size = 0x10000, scoped, tag = 'output window, operand 0']
    #allocation3 [shape = 's32[2]{0}', space=sflag, size = 0x8, scoped, tag = 'scoped memory for tpu_custom_call.1']
    %13 = vsyncpa [#allocation3], 0
    %s14 = scalar_lea.sflag [#allocation3], 1
    %15 = vsyncpa %s14, 0
    loop: start=0, step=1, limit=7
    $region2: #{tpu_custom_call.1} parent=1 // loop_pre_header
      _
    $region3: #{tpu_custom_call.1} parent=1 // loop_header
      %s17 = sphi 0, %s21
      %p18 = scmp.ge.s32.totalorder %s17, 7
      %s27 = sphi 0, %s29
      %s30 = sphi 0, %s27
      %s31 = sphi 0, %s30
      %s47 = sphi 0, %s31
      %s51 = sphi 0, %s51
      %s53 = sphi 0, %s51
      %s54 = sphi 0, %s53
      %s68 = sphi 0, %s54
      %s72 = sphi 0, %s72
      %s74 = sphi 0, %s72
      %s75 = sphi 0, %s74
      %s89 = sphi 0, %s75
      %s95 = sphi 0, %s97
      %s98 = sphi 0, %s95
      %s99 = sphi 0, %s98
      %s115 = sphi 0, %s99
      %s119 = sphi 0, %s119
      %s121 = sphi 0, %s119
      %s122 = sphi 0, %s121
      %s136 = sphi 0, %s122
      %s140 = sphi 0, %s140
      %s142 = sphi 0, %s140
      %s143 = sphi 0, %s142
      %s157 = sphi 0, %s143
      %s161 = sphi 0, %s161
      %s163 = sphi 0, %s161
      %s164 = sphi 0, %s163
      %s178 = sphi 0, %s164
      %s182 = sphi 0, %s182
      %s184 = sphi 0, %s182
      %s185 = sphi 0, %s184
      %s199 = sphi 0, %s185
      %s205 = sphi 0, %s207
      %s208 = sphi 0, %s205
      %s209 = sphi 0, %s208
      %s225 = sphi 0, %s209
    $region4: #{tpu_custom_call.1} parent=1 // loop_header_branch
      %20 = sbr.rel (%p18) target = $region8
    $region5: #{tpu_custom_call.1} parent=1 // loop_body
      %s22 = ssub.s32 %s17, 1
      %s23 = ssub.s32 %s17, 2
      %s24 = sadd.s32 %s17, 1
      %s25 = ssub.s32 %s17, %s24
      %p26 = scmp.eq.s32.totalorder %s25, 0
      %s28 = sadd.s32 %s27, 1
      %s29 = scalar_select %p26, %s27, %s28
      %p32 = pneg %p26
      %p33 = scmp.eq.s32.totalorder %s17, 4
      %p34 = por %p32, %p33
      %p35 = scmp.ne.s32.totalorder %s27, %s30
      %p36 = scmp.eq.s32.totalorder %s17, 0
      %p37 = por %p35, %p36
      %p38 = scmp.ne.s32.totalorder %s27, %s30
      %p39 = scmp.eq.s32.totalorder %s22, 4
      %p40 = por %p38, %p39
      %p41 = scmp.ne.s32.totalorder %s30, %s31
      %p42 = scmp.eq.s32.totalorder %s22, 0
      %p43 = por %p41, %p42
      %p44 = scmp.ne.s32.totalorder %s30, %s31
      %p45 = scmp.eq.s32.totalorder %s23, 4
      %p46 = por %p44, %p45
      %p48 = scmp.ne.s32.totalorder %s31, %s47
      %p49 = scmp.eq.s32.totalorder %s23, 0
      %p50 = por %p48, %p49
      %s52 = sadd.s32 %s51, 1
      %p55 = scmp.eq.s32.totalorder %s17, 4
      %p56 = scmp.ne.s32.totalorder %s51, %s53
      %p57 = scmp.eq.s32.totalorder %s17, 0
      %p58 = por %p56, %p57
      %p59 = scmp.ne.s32.totalorder %s51, %s53
      %p60 = scmp.eq.s32.totalorder %s22, 4
      %p61 = por %p59, %p60
      %p62 = scmp.ne.s32.totalorder %s53, %s54
      %p63 = scmp.eq.s32.totalorder %s22, 0
      %p64 = por %p62, %p63
      %p65 = scmp.ne.s32.totalorder %s53, %s54
      %p66 = scmp.eq.s32.totalorder %s23, 4
      %p67 = por %p65, %p66
      %p69 = scmp.ne.s32.totalorder %s54, %s68
      %p70 = scmp.eq.s32.totalorder %s23, 0
      %p71 = por %p69, %p70
      %s73 = sadd.s32 %s72, 1
      %p76 = scmp.eq.s32.totalorder %s17, 4
      %p77 = scmp.ne.s32.totalorder %s72, %s74
      %p78 = scmp.eq.s32.totalorder %s17, 0
      %p79 = por %p77, %p78
      %p80 = scmp.ne.s32.totalorder %s72, %s74
      %p81 = scmp.eq.s32.totalorder %s22, 4
      %p82 = por %p80, %p81
      %p83 = scmp.ne.s32.totalorder %s74, %s75
      %p84 = scmp.eq.s32.totalorder %s22, 0
      %p85 = por %p83, %p84
      %p86 = scmp.ne.s32.totalorder %s74, %s75
      %p87 = scmp.eq.s32.totalorder %s23, 4
      %p88 = por %p86, %p87
      %p90 = scmp.ne.s32.totalorder %s75, %s89
      %p91 = scmp.eq.s32.totalorder %s23, 0
      %p92 = por %p90, %p91
      %s93 = ssub.s32 %s17, %s24
      %p94 = scmp.eq.s32.totalorder %s93, 0
      %s96 = sadd.s32 %s95, 1
      %s97 = scalar_select %p94, %s95, %s96
      %p100 = pneg %p94
      %p101 = scmp.eq.s32.totalorder %s17, 4
      %p102 = por %p100, %p101
      %p103 = scmp.ne.s32.totalorder %s95, %s98
      %p104 = scmp.eq.s32.totalorder %s17, 0
      %p105 = por %p103, %p104
      %p106 = scmp.ne.s32.totalorder %s95, %s98
      %p107 = scmp.eq.s32.totalorder %s22, 4
      %p108 = por %p106, %p107
      %p109 = scmp.ne.s32.totalorder %s98, %s99
      %p110 = scmp.eq.s32.totalorder %s22, 0
      %p111 = por %p109, %p110
      %p112 = scmp.ne.s32.totalorder %s98, %s99
      %p113 = scmp.eq.s32.totalorder %s23, 4
      %p114 = por %p112, %p113
      %p116 = scmp.ne.s32.totalorder %s99, %s115
      %p117 = scmp.eq.s32.totalorder %s23, 0
      %p118 = por %p116, %p117
      %s120 = sadd.s32 %s119, 1
      %p123 = scmp.eq.s32.totalorder %s17, 4
      %p124 = scmp.ne.s32.totalorder %s119, %s121
      %p125 = scmp.eq.s32.totalorder %s17, 0
      %p126 = por %p124, %p125
      %p127 = scmp.ne.s32.totalorder %s119, %s121
      %p128 = scmp.eq.s32.totalorder %s22, 4
      %p129 = por %p127, %p128
      %p130 = scmp.ne.s32.totalorder %s121, %s122
      %p131 = scmp.eq.s32.totalorder %s22, 0
      %p132 = por %p130, %p131
      %p133 = scmp.ne.s32.totalorder %s121, %s122
      %p134 = scmp.eq.s32.totalorder %s23, 4
      %p135 = por %p133, %p134
      %p137 = scmp.ne.s32.totalorder %s122, %s136
      %p138 = scmp.eq.s32.totalorder %s23, 0
      %p139 = por %p137, %p138
      %s141 = sadd.s32 %s140, 1
      %p144 = scmp.eq.s32.totalorder %s17, 4
      %p145 = scmp.ne.s32.totalorder %s140, %s142
      %p146 = scmp.eq.s32.totalorder %s17, 0
      %p147 = por %p145, %p146
      %p148 = scmp.ne.s32.totalorder %s140, %s142
      %p149 = scmp.eq.s32.totalorder %s22, 4
      %p150 = por %p148, %p149
      %p151 = scmp.ne.s32.totalorder %s142, %s143
      %p152 = scmp.eq.s32.totalorder %s22, 0
      %p153 = por %p151, %p152
      %p154 = scmp.ne.s32.totalorder %s142, %s143
      %p155 = scmp.eq.s32.totalorder %s23, 4
      %p156 = por %p154, %p155
      %p158 = scmp.ne.s32.totalorder %s143, %s157
      %p159 = scmp.eq.s32.totalorder %s23, 0
      %p160 = por %p158, %p159
      %s162 = sadd.s32 %s161, 1
      %p165 = scmp.eq.s32.totalorder %s17, 4
      %p166 = scmp.ne.s32.totalorder %s161, %s163
      %p167 = scmp.eq.s32.totalorder %s17, 0
      %p168 = por %p166, %p167
      %p169 = scmp.ne.s32.totalorder %s161, %s163
      %p170 = scmp.eq.s32.totalorder %s22, 4
      %p171 = por %p169, %p170
      %p172 = scmp.ne.s32.totalorder %s163, %s164
      %p173 = scmp.eq.s32.totalorder %s22, 0
      %p174 = por %p172, %p173
      %p175 = scmp.ne.s32.totalorder %s163, %s164
      %p176 = scmp.eq.s32.totalorder %s23, 4
      %p177 = por %p175, %p176
      %p179 = scmp.ne.s32.totalorder %s164, %s178
      %p180 = scmp.eq.s32.totalorder %s23, 0
      %p181 = por %p179, %p180
      %s183 = sadd.s32 %s182, 1
      %p186 = scmp.eq.s32.totalorder %s17, 4
      %p187 = scmp.ne.s32.totalorder %s182, %s184
      %p188 = scmp.eq.s32.totalorder %s17, 0
      %p189 = por %p187, %p188
      %p190 = scmp.ne.s32.totalorder %s182, %s184
      %p191 = scmp.eq.s32.totalorder %s22, 4
      %p192 = por %p190, %p191
      %p193 = scmp.ne.s32.totalorder %s184, %s185
      %p194 = scmp.eq.s32.totalorder %s22, 0
      %p195 = por %p193, %p194
      %p196 = scmp.ne.s32.totalorder %s184, %s185
      %p197 = scmp.eq.s32.totalorder %s23, 4
      %p198 = por %p196, %p197
      %p200 = scmp.ne.s32.totalorder %s185, %s199
      %p201 = scmp.eq.s32.totalorder %s23, 0
      %p202 = por %p200, %p201
      %s203 = ssub.s32 %s17, %s24
      %p204 = scmp.eq.s32.totalorder %s203, 0
      %s206 = sadd.s32 %s205, 1
      %s207 = scalar_select %p204, %s205, %s206
      %p210 = pneg %p204
      %p211 = scmp.eq.s32.totalorder %s17, 4
      %p212 = por %p210, %p211
      %p213 = scmp.ne.s32.totalorder %s205, %s208
      %p214 = scmp.eq.s32.totalorder %s17, 0
      %p215 = por %p213, %p214
      %p216 = scmp.ne.s32.totalorder %s205, %s208
      %p217 = scmp.eq.s32.totalorder %s22, 4
      %p218 = por %p216, %p217
      %p219 = scmp.ne.s32.totalorder %s208, %s209
      %p220 = scmp.eq.s32.totalorder %s22, 0
      %p221 = por %p219, %p220
      %p222 = scmp.ne.s32.totalorder %s208, %s209
      %p223 = scmp.eq.s32.totalorder %s23, 4
      %p224 = por %p222, %p223
      %p226 = scmp.ne.s32.totalorder %s209, %s225
      %p227 = scmp.eq.s32.totalorder %s23, 0
      %p228 = por %p226, %p227
      %p229 = scmp.le.s32.totalorder 1, %s17
      %p230 = scmp.lt.s32.totalorder %s17, 6
      %p231 = pnand %p229, %p230
      %p232 = pneg %p231
      // Predicated region
      $region9: #{tpu_custom_call.1} parent=5 // pred_check
        _
      $region10: #{tpu_custom_call.1} parent=5 // pred_check_branch
        %234 = sbr.rel (%p231) target = $region12
      $region11: #{tpu_custom_call.1} parent=5 // pred_region
        %s235 = ssub.s32 %s17, 1
        // Predicated region
        $region13: #{tpu_custom_call.1} parent=11 // pred_check
          %p236 = pneg %p64
        $region14: #{tpu_custom_call.1} parent=11 // pred_check_branch
          %238 = sbr.rel (%p236) target = $region16
        $region15: #{tpu_custom_call.1} parent=11 // pred_region
          _
        $region16: #{tpu_custom_call.1} parent=11 // pred_fallthru
          _
        // Predicated region
        $region17: #{tpu_custom_call.1} parent=11 // pred_check
          %p239 = pneg %p85
        $region18: #{tpu_custom_call.1} parent=11 // pred_check_branch
          %241 = sbr.rel (%p239) target = $region20
        $region19: #{tpu_custom_call.1} parent=11 // pred_region
          _
        $region20: #{tpu_custom_call.1} parent=11 // pred_fallthru
          _
        // Predicated region
        $region21: #{tpu_custom_call.1} parent=11 // pred_check
          %p242 = pneg %p132
        $region22: #{tpu_custom_call.1} parent=11 // pred_check_branch
          %244 = sbr.rel (%p242) target = $region24
        $region23: #{tpu_custom_call.1} parent=11 // pred_region
          _
        $region24: #{tpu_custom_call.1} parent=11 // pred_fallthru
          _
        // Predicated region
        $region25: #{tpu_custom_call.1} parent=11 // pred_check
          %p245 = pneg %p153
        $region26: #{tpu_custom_call.1} parent=11 // pred_check_branch
          %247 = sbr.rel (%p245) target = $region28
        $region27: #{tpu_custom_call.1} parent=11 // pred_region
          _
        $region28: #{tpu_custom_call.1} parent=11 // pred_fallthru
          _
        // Predicated region
        $region29: #{tpu_custom_call.1} parent=11 // pred_check
          %p248 = pneg %p174
        $region30: #{tpu_custom_call.1} parent=11 // pred_check_branch
          %250 = sbr.rel (%p248) target = $region32
        $region31: #{tpu_custom_call.1} parent=11 // pred_region
          _
        $region32: #{tpu_custom_call.1} parent=11 // pred_fallthru
          _
        // Predicated region
        $region33: #{tpu_custom_call.1} parent=11 // pred_check
          %p251 = pneg %p195
        $region34: #{tpu_custom_call.1} parent=11 // pred_check_branch
          %253 = sbr.rel (%p251) target = $region36
        $region35: #{tpu_custom_call.1} parent=11 // pred_region
          _
        $region36: #{tpu_custom_call.1} parent=11 // pred_fallthru
          _
      $region12: #{tpu_custom_call.1} parent=5 // pred_fallthru
        _
      %p254 = scmp.lt.s32.totalorder %s17, 5
      // Predicated region
      $region37: #{tpu_custom_call.1} parent=5 // pred_check
        %p255 = pneg %p254
      $region38: #{tpu_custom_call.1} parent=5 // pred_check_branch
        %257 = sbr.rel (%p255) target = $region40
      $region39: #{tpu_custom_call.1} parent=5 // pred_region
        // Predicated region
        $region41: #{tpu_custom_call.1} parent=39 // pred_check
          %p258 = pneg %p37
        $region42: #{tpu_custom_call.1} parent=39 // pred_check_branch
          %260 = sbr.rel (%p258) target = $region44
        $region43: #{tpu_custom_call.1} parent=39 // pred_region
          %s261 = smul.u32 16, %s17
          %p262 = scmp.lt.s32.totalorder %s261, 79
          %s263 = scalar_select %p262, %s261, 79
          %s264 = smul.addr %s263, 8
          %s265 = scalar_lea.vmem %s0, %s264
          %s266 = smul.u32 16, %s17
        $region44: #{tpu_custom_call.1} parent=39 // pred_fallthru
          _
        // Predicated region
        $region45: #{tpu_custom_call.1} parent=39 // pred_check
          %p267 = pneg %p105
        $region46: #{tpu_custom_call.1} parent=39 // pred_check_branch
          %269 = sbr.rel (%p267) target = $region48
        $region47: #{tpu_custom_call.1} parent=39 // pred_region
          %s270 = smul.u32 16, %s17
          %p271 = scmp.lt.s32.totalorder %s270, 79
          %s272 = scalar_select %p271, %s270, 79
          %s273 = smul.addr %s272, 4
          %s274 = scalar_lea.vmem %s3, %s273
          %s275 = smul.u32 16, %s17
        $region48: #{tpu_custom_call.1} parent=39 // pred_fallthru
          _
      $region40: #{tpu_custom_call.1} parent=5 // pred_fallthru
        _
      %p276 = scmp.le.s32.totalorder 1, %s17
      %p277 = scmp.lt.s32.totalorder %s17, 6
      %p278 = pnand %p276, %p277
      %p279 = pneg %p278
      // Predicated region
      $region49: #{tpu_custom_call.1} parent=5 // pred_check
        _
      $region50: #{tpu_custom_call.1} parent=5 // pred_check_branch
        %281 = sbr.rel (%p278) target = $region52
      $region51: #{tpu_custom_call.1} parent=5 // pred_region
        %s282 = ssub.s32 %s17, 1
        %s283 = smul.u32 16, %s22
        %p284 = scmp.lt.s32.totalorder %s283, 79
        %s285 = scalar_select %p284, %s283, 79
        %s286 = smul.addr %s285, 8
        %s287 = scalar_lea.vmem %s0, %s286
        %p288 = pneg %p43
        %p289 = pneg %p40
        %p290 = pneg %p64
        %p291 = pneg %p61
        %p292 = pneg %p85
        %p293 = pneg %p82
        %s294 = smul.u32 16, %s22
        %p295 = scmp.lt.s32.totalorder %s294, 79
        %s296 = scalar_select %p295, %s294, 79
        %s297 = smul.addr %s296, 4
        %s298 = scalar_lea.vmem %s3, %s297
        %p299 = pneg %p111
        %p300 = pneg %p108
        %p301 = pneg %p132
        %p302 = pneg %p129
        %p303 = pneg %p153
        %p304 = pneg %p150
        %p305 = pneg %p174
        %p306 = pneg %p171
        %p307 = pneg %p195
        %p308 = pneg %p192
        %p309 = pneg %p221
        %p310 = pneg %p218
        %s311 = sand.u32 %s208, 1
        %s312 = scalar_lea.sflag [#allocation3], %s311
        %s313 = sand.u32 %s208, 1
        %s314 = smul.addr %s313, 64
        %s315 = scalar_lea.vmem [#allocation2], %s314
        %s316 = smul.u32 16, %s22
        %p317 = scmp.lt.s32.totalorder %s316, 79
        %s318 = scalar_select %p317, %s316, 79
        %s319 = smul.addr %s318, 8
        %s320 = scalar_lea.vmem %s0, %s319
        %s321 = smul.u32 16, %s22
        %s322 = smul.u32 16, %s22
        %p323 = scmp.lt.s32.totalorder %s322, 79
        %s324 = scalar_select %p323, %s322, 79
        %s325 = smul.addr %s324, 4
        %s326 = scalar_lea.vmem %s3, %s325
        %s327 = smul.u32 16, %s22
        %s328 = smul.u32 16, %s22
        %v330 = vld [vmem:[%s320] sm:$0xff]
        %v331 = vld [vmem:[%s320 + $0x8] sm:$0xff]
        %v332 = vld [vmem:[%s320 + $0x10] sm:$0xff]
        %v333 = vld [vmem:[%s320 + $0x18] sm:$0xff]
        %v334 = vld [vmem:[%s320 + $0x20] sm:$0xff]
        %v335 = vld [vmem:[%s320 + $0x28] sm:$0xff]
        %v336 = vld [vmem:[%s320 + $0x30] sm:$0xff]
        %v337 = vld [vmem:[%s320 + $0x38] sm:$0xff]
        %v338 = vld [vmem:[%s320 + $0x40] sm:$0xff]
        %v339 = vld [vmem:[%s320 + $0x48] sm:$0xff]
        %v340 = vld [vmem:[%s320 + $0x50] sm:$0xff]
        %v341 = vld [vmem:[%s320 + $0x58] sm:$0xff]
        %v342 = vld [vmem:[%s320 + $0x60] sm:$0xff]
        %v343 = vld [vmem:[%s320 + $0x68] sm:$0xff]
        %v344 = vld [vmem:[%s320 + $0x70] sm:$0xff]
        %v345 = vld [vmem:[%s320 + $0x78] sm:$0xff]
        %v346 = vld [vmem:[%s1] sm:$0xff]
        %348 = vset.pattern.permute.xlu0 1
        %349 = vperm.xlu0 %348, %v330
        %v350 = vpop.permute.xlu0 %349
        %353 = vset.pattern.permute.xlu0 1
        %354 = vperm.xlu0 %353, %v331
        %v355 = vpop.permute.xlu0 %354
        %358 = vset.pattern.permute.xlu0 1
        %359 = vperm.xlu0 %358, %v332
        %v360 = vpop.permute.xlu0 %359
        %363 = vset.pattern.permute.xlu0 1
        %364 = vperm.xlu0 %363, %v333
        %v365 = vpop.permute.xlu0 %364
        %368 = vset.pattern.permute.xlu0 1
        %369 = vperm.xlu0 %368, %v334
        %v370 = vpop.permute.xlu0 %369
        %373 = vset.pattern.permute.xlu0 1
        %374 = vperm.xlu0 %373, %v335
        %v375 = vpop.permute.xlu0 %374
        %378 = vset.pattern.permute.xlu0 1
        %379 = vperm.xlu0 %378, %v336
        %v380 = vpop.permute.xlu0 %379
        %383 = vset.pattern.permute.xlu0 1
        %384 = vperm.xlu0 %383, %v337
        %v385 = vpop.permute.xlu0 %384
        %388 = vset.pattern.permute.xlu0 1
        %389 = vperm.xlu0 %388, %v338
        %v390 = vpop.permute.xlu0 %389
        %393 = vset.pattern.permute.xlu0 1
        %394 = vperm.xlu0 %393, %v339
        %v395 = vpop.permute.xlu0 %394
        %398 = vset.pattern.permute.xlu0 1
        %399 = vperm.xlu0 %398, %v340
        %v400 = vpop.permute.xlu0 %399
        %403 = vset.pattern.permute.xlu0 1
        %404 = vperm.xlu0 %403, %v341
        %v405 = vpop.permute.xlu0 %404
        %408 = vset.pattern.permute.xlu0 1
        %409 = vperm.xlu0 %408, %v342
        %v410 = vpop.permute.xlu0 %409
        %413 = vset.pattern.permute.xlu0 1
        %414 = vperm.xlu0 %413, %v343
        %v415 = vpop.permute.xlu0 %414
        %418 = vset.pattern.permute.xlu0 1
        %419 = vperm.xlu0 %418, %v344
        %v420 = vpop.permute.xlu0 %419
        %423 = vset.pattern.permute.xlu0 1
        %424 = vperm.xlu0 %423, %v345
        %v425 = vpop.permute.xlu0 %424
        %v428 = vlaneseq
        %v429 = vshrl.u32 %v428, 7
        %v430 = vsub.s32 1, %v429
        %v431 = vrot.slane %v346, %v430
        %v432 = vlaneseq
        %v433 = vshrl.u32 %v432, 7
        %v434 = vsub.s32 5, %v433
        %v435 = vrot.slane %v346, %v434
        %v438 = vlaneseq
        %v439 = vshrl.u32 %v438, 7
        %v440 = vsub.s32 1, %v439
        %v441 = vrot.slane %v431, %v440
        %v442 = vlaneseq
        %v443 = vshrl.u32 %v442, 7
        %v444 = vsub.s32 1, %v443
        %v445 = vrot.slane %v435, %v444
        %v446 = vsub.f32 %v350, %v441
        %v447 = vsub.f32 %v350, %v445
        %v448 = vsub.f32 %v355, %v441
        %v449 = vsub.f32 %v355, %v445
        %v450 = vsub.f32 %v360, %v441
        %v451 = vsub.f32 %v360, %v445
        %v452 = vsub.f32 %v365, %v441
        %v453 = vsub.f32 %v365, %v445
        %v454 = vsub.f32 %v370, %v441
        %v455 = vsub.f32 %v370, %v445
        %v456 = vsub.f32 %v375, %v441
        %v457 = vsub.f32 %v375, %v445
        %v458 = vsub.f32 %v380, %v441
        %v459 = vsub.f32 %v380, %v445
        %v460 = vsub.f32 %v385, %v441
        %v461 = vsub.f32 %v385, %v445
        %v462 = vsub.f32 %v390, %v441
        %v463 = vsub.f32 %v390, %v445
        %v464 = vsub.f32 %v395, %v441
        %v465 = vsub.f32 %v395, %v445
        %v466 = vsub.f32 %v400, %v441
        %v467 = vsub.f32 %v400, %v445
        %v468 = vsub.f32 %v405, %v441
        %v469 = vsub.f32 %v405, %v445
        %v470 = vsub.f32 %v410, %v441
        %v471 = vsub.f32 %v410, %v445
        %v472 = vsub.f32 %v415, %v441
        %v473 = vsub.f32 %v415, %v445
        %v474 = vsub.f32 %v420, %v441
        %v475 = vsub.f32 %v420, %v445
        %v476 = vsub.f32 %v425, %v441
        %v477 = vsub.f32 %v425, %v445
        %478 = vset.pattern.permute.xlu0 2
        %479 = vperm.xlu0 %478, %v330
        %v480 = vpop.permute.xlu0 %479
        %482 = vset.pattern.permute.xlu0 2
        %483 = vperm.xlu0 %482, %v331
        %v484 = vpop.permute.xlu0 %483
        %486 = vset.pattern.permute.xlu0 2
        %487 = vperm.xlu0 %486, %v332
        %v488 = vpop.permute.xlu0 %487
        %490 = vset.pattern.permute.xlu0 2
        %491 = vperm.xlu0 %490, %v333
        %v492 = vpop.permute.xlu0 %491
        %494 = vset.pattern.permute.xlu0 2
        %495 = vperm.xlu0 %494, %v334
        %v496 = vpop.permute.xlu0 %495
        %498 = vset.pattern.permute.xlu0 2
        %499 = vperm.xlu0 %498, %v335
        %v500 = vpop.permute.xlu0 %499
        %502 = vset.pattern.permute.xlu0 2
        %503 = vperm.xlu0 %502, %v336
        %v504 = vpop.permute.xlu0 %503
        %506 = vset.pattern.permute.xlu0 2
        %507 = vperm.xlu0 %506, %v337
        %v508 = vpop.permute.xlu0 %507
        %510 = vset.pattern.permute.xlu0 2
        %511 = vperm.xlu0 %510, %v338
        %v512 = vpop.permute.xlu0 %511
        %514 = vset.pattern.permute.xlu0 2
        %515 = vperm.xlu0 %514, %v339
        %v516 = vpop.permute.xlu0 %515
        %518 = vset.pattern.permute.xlu0 2
        %519 = vperm.xlu0 %518, %v340
        %v520 = vpop.permute.xlu0 %519
        %522 = vset.pattern.permute.xlu0 2
        %523 = vperm.xlu0 %522, %v341
        %v524 = vpop.permute.xlu0 %523
        %526 = vset.pattern.permute.xlu0 2
        %527 = vperm.xlu0 %526, %v342
        %v528 = vpop.permute.xlu0 %527
        %530 = vset.pattern.permute.xlu0 2
        %531 = vperm.xlu0 %530, %v343
        %v532 = vpop.permute.xlu0 %531
        %534 = vset.pattern.permute.xlu0 2
        %535 = vperm.xlu0 %534, %v344
        %v536 = vpop.permute.xlu0 %535
        %538 = vset.pattern.permute.xlu0 2
        %539 = vperm.xlu0 %538, %v345
        %v540 = vpop.permute.xlu0 %539
        %v542 = vlaneseq
        %v543 = vshrl.u32 %v542, 7
        %v544 = vsub.s32 2, %v543
        %v545 = vrot.slane %v346, %v544
        %v546 = vlaneseq
        %v547 = vshrl.u32 %v546, 7
        %v548 = vsub.s32 6, %v547
        %v549 = vrot.slane %v346, %v548
        %v552 = vlaneseq
        %v553 = vshrl.u32 %v552, 7
        %v554 = vsub.s32 2, %v553
        %v555 = vrot.slane %v545, %v554
        %v556 = vlaneseq
        %v557 = vshrl.u32 %v556, 7
        %v558 = vsub.s32 2, %v557
        %v559 = vrot.slane %v549, %v558
        %v560 = vsub.f32 %v480, %v555
        %v561 = vsub.f32 %v480, %v559
        %v562 = vsub.f32 %v484, %v555
        %v563 = vsub.f32 %v484, %v559
        %v564 = vsub.f32 %v488, %v555
        %v565 = vsub.f32 %v488, %v559
        %v566 = vsub.f32 %v492, %v555
        %v567 = vsub.f32 %v492, %v559
        %v568 = vsub.f32 %v496, %v555
        %v569 = vsub.f32 %v496, %v559
        %v570 = vsub.f32 %v500, %v555
        %v571 = vsub.f32 %v500, %v559
        %v572 = vsub.f32 %v504, %v555
        %v573 = vsub.f32 %v504, %v559
        %v574 = vsub.f32 %v508, %v555
        %v575 = vsub.f32 %v508, %v559
        %v576 = vsub.f32 %v512, %v555
        %v577 = vsub.f32 %v512, %v559
        %v578 = vsub.f32 %v516, %v555
        %v579 = vsub.f32 %v516, %v559
        %v580 = vsub.f32 %v520, %v555
        %v581 = vsub.f32 %v520, %v559
        %v582 = vsub.f32 %v524, %v555
        %v583 = vsub.f32 %v524, %v559
        %v584 = vsub.f32 %v528, %v555
        %v585 = vsub.f32 %v528, %v559
        %v586 = vsub.f32 %v532, %v555
        %v587 = vsub.f32 %v532, %v559
        %v588 = vsub.f32 %v536, %v555
        %v589 = vsub.f32 %v536, %v559
        %v590 = vsub.f32 %v540, %v555
        %v591 = vsub.f32 %v540, %v559
        %592 = vset.pattern.permute.xlu0 3
        %593 = vperm.xlu0 %592, %v330
        %v594 = vpop.permute.xlu0 %593
        %596 = vset.pattern.permute.xlu0 3
        %597 = vperm.xlu0 %596, %v331
        %v598 = vpop.permute.xlu0 %597
        %600 = vset.pattern.permute.xlu0 3
        %601 = vperm.xlu0 %600, %v332
        %v602 = vpop.permute.xlu0 %601
        %604 = vset.pattern.permute.xlu0 3
        %605 = vperm.xlu0 %604, %v333
        %v606 = vpop.permute.xlu0 %605
        %608 = vset.pattern.permute.xlu0 3
        %609 = vperm.xlu0 %608, %v334
        %v610 = vpop.permute.xlu0 %609
        %612 = vset.pattern.permute.xlu0 3
        %613 = vperm.xlu0 %612, %v335
        %v614 = vpop.permute.xlu0 %613
        %616 = vset.pattern.permute.xlu0 3
        %617 = vperm.xlu0 %616, %v336
        %v618 = vpop.permute.xlu0 %617
        %620 = vset.pattern.permute.xlu0 3
        %621 = vperm.xlu0 %620, %v337
        %v622 = vpop.permute.xlu0 %621
        %624 = vset.pattern.permute.xlu0 3
        %625 = vperm.xlu0 %624, %v338
        %v626 = vpop.permute.xlu0 %625
        %628 = vset.pattern.permute.xlu0 3
        %629 = vperm.xlu0 %628, %v339
        %v630 = vpop.permute.xlu0 %629
        %632 = vset.pattern.permute.xlu0 3
        %633 = vperm.xlu0 %632, %v340
        %v634 = vpop.permute.xlu0 %633
        %636 = vset.pattern.permute.xlu0 3
        %637 = vperm.xlu0 %636, %v341
        %v638 = vpop.permute.xlu0 %637
        %640 = vset.pattern.permute.xlu0 3
        %641 = vperm.xlu0 %640, %v342
        %v642 = vpop.permute.xlu0 %641
        %644 = vset.pattern.permute.xlu0 3
        %645 = vperm.xlu0 %644, %v343
        %v646 = vpop.permute.xlu0 %645
        %648 = vset.pattern.permute.xlu0 3
        %649 = vperm.xlu0 %648, %v344
        %v650 = vpop.permute.xlu0 %649
        %652 = vset.pattern.permute.xlu0 3
        %653 = vperm.xlu0 %652, %v345
        %v654 = vpop.permute.xlu0 %653
        %v656 = vlaneseq
        %v657 = vshrl.u32 %v656, 7
        %v658 = vsub.s32 3, %v657
        %v659 = vrot.slane %v346, %v658
        %v660 = vlaneseq
        %v661 = vshrl.u32 %v660, 7
        %v662 = vsub.s32 7, %v661
        %v663 = vrot.slane %v346, %v662
        %v666 = vlaneseq
        %v667 = vshrl.u32 %v666, 7
        %v668 = vsub.s32 3, %v667
        %v669 = vrot.slane %v659, %v668
        %v670 = vlaneseq
        %v671 = vshrl.u32 %v670, 7
        %v672 = vsub.s32 3, %v671
        %v673 = vrot.slane %v663, %v672
        %v674 = vsub.f32 %v594, %v669
        %v675 = vsub.f32 %v594, %v673
        %v676 = vsub.f32 %v598, %v669
        %v677 = vsub.f32 %v598, %v673
        %v678 = vsub.f32 %v602, %v669
        %v679 = vsub.f32 %v602, %v673
        %v680 = vsub.f32 %v606, %v669
        %v681 = vsub.f32 %v606, %v673
        %v682 = vsub.f32 %v610, %v669
        %v683 = vsub.f32 %v610, %v673
        %v684 = vsub.f32 %v614, %v669
        %v685 = vsub.f32 %v614, %v673
        %v686 = vsub.f32 %v618, %v669
        %v687 = vsub.f32 %v618, %v673
        %v688 = vsub.f32 %v622, %v669
        %v689 = vsub.f32 %v622, %v673
        %v690 = vsub.f32 %v626, %v669
        %v691 = vsub.f32 %v626, %v673
        %v692 = vsub.f32 %v630, %v669
        %v693 = vsub.f32 %v630, %v673
        %v694 = vsub.f32 %v634, %v669
        %v695 = vsub.f32 %v634, %v673
        %v696 = vsub.f32 %v638, %v669
        %v697 = vsub.f32 %v638, %v673
        %v698 = vsub.f32 %v642, %v669
        %v699 = vsub.f32 %v642, %v673
        %v700 = vsub.f32 %v646, %v669
        %v701 = vsub.f32 %v646, %v673
        %v702 = vsub.f32 %v650, %v669
        %v703 = vsub.f32 %v650, %v673
        %v704 = vsub.f32 %v654, %v669
        %v705 = vsub.f32 %v654, %v673
        %v706 = vmul.f32 %v446, %v446
        %v707 = vmul.f32 %v447, %v447
        %v708 = vmul.f32 %v448, %v448
        %v709 = vmul.f32 %v449, %v449
        %v710 = vmul.f32 %v450, %v450
        %v711 = vmul.f32 %v451, %v451
        %v712 = vmul.f32 %v452, %v452
        %v713 = vmul.f32 %v453, %v453
        %v714 = vmul.f32 %v454, %v454
        %v715 = vmul.f32 %v455, %v455
        %v716 = vmul.f32 %v456, %v456
        %v717 = vmul.f32 %v457, %v457
        %v718 = vmul.f32 %v458, %v458
        %v719 = vmul.f32 %v459, %v459
        %v720 = vmul.f32 %v460, %v460
        %v721 = vmul.f32 %v461, %v461
        %v722 = vmul.f32 %v462, %v462
        %v723 = vmul.f32 %v463, %v463
        %v724 = vmul.f32 %v464, %v464
        %v725 = vmul.f32 %v465, %v465
        %v726 = vmul.f32 %v466, %v466
        %v727 = vmul.f32 %v467, %v467
        %v728 = vmul.f32 %v468, %v468
        %v729 = vmul.f32 %v469, %v469
        %v730 = vmul.f32 %v470, %v470
        %v731 = vmul.f32 %v471, %v471
        %v732 = vmul.f32 %v472, %v472
        %v733 = vmul.f32 %v473, %v473
        %v734 = vmul.f32 %v474, %v474
        %v735 = vmul.f32 %v475, %v475
        %v736 = vmul.f32 %v476, %v476
        %v737 = vmul.f32 %v477, %v477
        %v738 = vmul.f32 %v560, %v560
        %v739 = vmul.f32 %v561, %v561
        %v740 = vmul.f32 %v562, %v562
        %v741 = vmul.f32 %v563, %v563
        %v742 = vmul.f32 %v564, %v564
        %v743 = vmul.f32 %v565, %v565
        %v744 = vmul.f32 %v566, %v566
        %v745 = vmul.f32 %v567, %v567
        %v746 = vmul.f32 %v568, %v568
        %v747 = vmul.f32 %v569, %v569
        %v748 = vmul.f32 %v570, %v570
        %v749 = vmul.f32 %v571, %v571
        %v750 = vmul.f32 %v572, %v572
        %v751 = vmul.f32 %v573, %v573
        %v752 = vmul.f32 %v574, %v574
        %v753 = vmul.f32 %v575, %v575
        %v754 = vmul.f32 %v576, %v576
        %v755 = vmul.f32 %v577, %v577
        %v756 = vmul.f32 %v578, %v578
        %v757 = vmul.f32 %v579, %v579
        %v758 = vmul.f32 %v580, %v580
        %v759 = vmul.f32 %v581, %v581
        %v760 = vmul.f32 %v582, %v582
        %v761 = vmul.f32 %v583, %v583
        %v762 = vmul.f32 %v584, %v584
        %v763 = vmul.f32 %v585, %v585
        %v764 = vmul.f32 %v586, %v586
        %v765 = vmul.f32 %v587, %v587
        %v766 = vmul.f32 %v588, %v588
        %v767 = vmul.f32 %v589, %v589
        %v768 = vmul.f32 %v590, %v590
        %v769 = vmul.f32 %v591, %v591
        %v770 = vadd.f32 %v706, %v738
        %v771 = vadd.f32 %v707, %v739
        %v772 = vadd.f32 %v708, %v740
        %v773 = vadd.f32 %v709, %v741
        %v774 = vadd.f32 %v710, %v742
        %v775 = vadd.f32 %v711, %v743
        %v776 = vadd.f32 %v712, %v744
        %v777 = vadd.f32 %v713, %v745
        %v778 = vadd.f32 %v714, %v746
        %v779 = vadd.f32 %v715, %v747
        %v780 = vadd.f32 %v716, %v748
        %v781 = vadd.f32 %v717, %v749
        %v782 = vadd.f32 %v718, %v750
        %v783 = vadd.f32 %v719, %v751
        %v784 = vadd.f32 %v720, %v752
        %v785 = vadd.f32 %v721, %v753
        %v786 = vadd.f32 %v722, %v754
        %v787 = vadd.f32 %v723, %v755
        %v788 = vadd.f32 %v724, %v756
        %v789 = vadd.f32 %v725, %v757
        %v790 = vadd.f32 %v726, %v758
        %v791 = vadd.f32 %v727, %v759
        %v792 = vadd.f32 %v728, %v760
        %v793 = vadd.f32 %v729, %v761
        %v794 = vadd.f32 %v730, %v762
        %v795 = vadd.f32 %v731, %v763
        %v796 = vadd.f32 %v732, %v764
        %v797 = vadd.f32 %v733, %v765
        %v798 = vadd.f32 %v734, %v766
        %v799 = vadd.f32 %v735, %v767
        %v800 = vadd.f32 %v736, %v768
        %v801 = vadd.f32 %v737, %v769
        %v802 = vmul.f32 %v674, %v674
        %v803 = vmul.f32 %v675, %v675
        %v804 = vmul.f32 %v676, %v676
        %v805 = vmul.f32 %v677, %v677
        %v806 = vmul.f32 %v678, %v678
        %v807 = vmul.f32 %v679, %v679
        %v808 = vmul.f32 %v680, %v680
        %v809 = vmul.f32 %v681, %v681
        %v810 = vmul.f32 %v682, %v682
        %v811 = vmul.f32 %v683, %v683
        %v812 = vmul.f32 %v684, %v684
        %v813 = vmul.f32 %v685, %v685
        %v814 = vmul.f32 %v686, %v686
        %v815 = vmul.f32 %v687, %v687
        %v816 = vmul.f32 %v688, %v688
        %v817 = vmul.f32 %v689, %v689
        %v818 = vmul.f32 %v690, %v690
        %v819 = vmul.f32 %v691, %v691
        %v820 = vmul.f32 %v692, %v692
        %v821 = vmul.f32 %v693, %v693
        %v822 = vmul.f32 %v694, %v694
        %v823 = vmul.f32 %v695, %v695
        %v824 = vmul.f32 %v696, %v696
        %v825 = vmul.f32 %v697, %v697
        %v826 = vmul.f32 %v698, %v698
        %v827 = vmul.f32 %v699, %v699
        %v828 = vmul.f32 %v700, %v700
        %v829 = vmul.f32 %v701, %v701
        %v830 = vmul.f32 %v702, %v702
        %v831 = vmul.f32 %v703, %v703
        %v832 = vmul.f32 %v704, %v704
        %v833 = vmul.f32 %v705, %v705
        %v834 = vadd.f32 %v770, %v802
        %v835 = vadd.f32 %v771, %v803
        %v836 = vadd.f32 %v772, %v804
        %v837 = vadd.f32 %v773, %v805
        %v838 = vadd.f32 %v774, %v806
        %v839 = vadd.f32 %v775, %v807
        %v840 = vadd.f32 %v776, %v808
        %v841 = vadd.f32 %v777, %v809
        %v842 = vadd.f32 %v778, %v810
        %v843 = vadd.f32 %v779, %v811
        %v844 = vadd.f32 %v780, %v812
        %v845 = vadd.f32 %v781, %v813
        %v846 = vadd.f32 %v782, %v814
        %v847 = vadd.f32 %v783, %v815
        %v848 = vadd.f32 %v784, %v816
        %v849 = vadd.f32 %v785, %v817
        %v850 = vadd.f32 %v786, %v818
        %v851 = vadd.f32 %v787, %v819
        %v852 = vadd.f32 %v788, %v820
        %v853 = vadd.f32 %v789, %v821
        %v854 = vadd.f32 %v790, %v822
        %v855 = vadd.f32 %v791, %v823
        %v856 = vadd.f32 %v792, %v824
        %v857 = vadd.f32 %v793, %v825
        %v858 = vadd.f32 %v794, %v826
        %v859 = vadd.f32 %v795, %v827
        %v860 = vadd.f32 %v796, %v828
        %v861 = vadd.f32 %v797, %v829
        %v862 = vadd.f32 %v798, %v830
        %v863 = vadd.f32 %v799, %v831
        %v864 = vadd.f32 %v800, %v832
        %v865 = vadd.f32 %v801, %v833
        %v866 = vadd.f32 %v834, 1e-12
        %v867 = vadd.f32 %v835, 1e-12
        %v868 = vadd.f32 %v836, 1e-12
        %v869 = vadd.f32 %v837, 1e-12
        %v870 = vadd.f32 %v838, 1e-12
        %v871 = vadd.f32 %v839, 1e-12
        %v872 = vadd.f32 %v840, 1e-12
        %v873 = vadd.f32 %v841, 1e-12
        %v874 = vadd.f32 %v842, 1e-12
        %v875 = vadd.f32 %v843, 1e-12
        %v876 = vadd.f32 %v844, 1e-12
        %v877 = vadd.f32 %v845, 1e-12
        %v878 = vadd.f32 %v846, 1e-12
        %v879 = vadd.f32 %v847, 1e-12
        %v880 = vadd.f32 %v848, 1e-12
        %v881 = vadd.f32 %v849, 1e-12
        %v882 = vadd.f32 %v850, 1e-12
        %v883 = vadd.f32 %v851, 1e-12
        %v884 = vadd.f32 %v852, 1e-12
        %v885 = vadd.f32 %v853, 1e-12
        %v886 = vadd.f32 %v854, 1e-12
        %v887 = vadd.f32 %v855, 1e-12
        %v888 = vadd.f32 %v856, 1e-12
        %v889 = vadd.f32 %v857, 1e-12
        %v890 = vadd.f32 %v858, 1e-12
        %v891 = vadd.f32 %v859, 1e-12
        %v892 = vadd.f32 %v860, 1e-12
        %v893 = vadd.f32 %v861, 1e-12
        %v894 = vadd.f32 %v862, 1e-12
        %v895 = vadd.f32 %v863, 1e-12
        %v896 = vadd.f32 %v864, 1e-12
        %v897 = vadd.f32 %v865, 1e-12
        %898 = vset.pattern.permute.xlu0 0
        %899 = vperm.xlu0 %898, %v330
        %v900 = vpop.permute.xlu0 %899
        %902 = vset.pattern.permute.xlu0 0
        %903 = vperm.xlu0 %902, %v331
        %v904 = vpop.permute.xlu0 %903
        %906 = vset.pattern.permute.xlu0 0
        %907 = vperm.xlu0 %906, %v332
        %v908 = vpop.permute.xlu0 %907
        %910 = vset.pattern.permute.xlu0 0
        %911 = vperm.xlu0 %910, %v333
        %v912 = vpop.permute.xlu0 %911
        %914 = vset.pattern.permute.xlu0 0
        %915 = vperm.xlu0 %914, %v334
        %v916 = vpop.permute.xlu0 %915
        %918 = vset.pattern.permute.xlu0 0
        %919 = vperm.xlu0 %918, %v335
        %v920 = vpop.permute.xlu0 %919
        %922 = vset.pattern.permute.xlu0 0
        %923 = vperm.xlu0 %922, %v336
        %v924 = vpop.permute.xlu0 %923
        %926 = vset.pattern.permute.xlu0 0
        %927 = vperm.xlu0 %926, %v337
        %v928 = vpop.permute.xlu0 %927
        %930 = vset.pattern.permute.xlu0 0
        %931 = vperm.xlu0 %930, %v338
        %v932 = vpop.permute.xlu0 %931
        %934 = vset.pattern.permute.xlu0 0
        %935 = vperm.xlu0 %934, %v339
        %v936 = vpop.permute.xlu0 %935
        %938 = vset.pattern.permute.xlu0 0
        %939 = vperm.xlu0 %938, %v340
        %v940 = vpop.permute.xlu0 %939
        %942 = vset.pattern.permute.xlu0 0
        %943 = vperm.xlu0 %942, %v341
        %v944 = vpop.permute.xlu0 %943
        %946 = vset.pattern.permute.xlu0 0
        %947 = vperm.xlu0 %946, %v342
        %v948 = vpop.permute.xlu0 %947
        %950 = vset.pattern.permute.xlu0 0
        %951 = vperm.xlu0 %950, %v343
        %v952 = vpop.permute.xlu0 %951
        %954 = vset.pattern.permute.xlu0 0
        %955 = vperm.xlu0 %954, %v344
        %v956 = vpop.permute.xlu0 %955
        %958 = vset.pattern.permute.xlu0 0
        %959 = vperm.xlu0 %958, %v345
        %v960 = vpop.permute.xlu0 %959
        %v962 = vlaneseq
        %v963 = vshrl.u32 %v962, 7
        %v964 = vsub.s32 0, %v963
        %v965 = vrot.slane %v346, %v964
        %v966 = vlaneseq
        %v967 = vshrl.u32 %v966, 7
        %v968 = vsub.s32 4, %v967
        %v969 = vrot.slane %v346, %v968
        %v972 = vlaneseq
        %v973 = vshrl.u32 %v972, 7
        %v974 = vsub.s32 0, %v973
        %v975 = vrot.slane %v965, %v974
        %v976 = vlaneseq
        %v977 = vshrl.u32 %v976, 7
        %v978 = vsub.s32 0, %v977
        %v979 = vrot.slane %v969, %v978
        %vm980 = vcmp.eq.f32.partialorder %v900, %v975
        %vm981 = vcmp.eq.f32.partialorder %v900, %v979
        %vm982 = vcmp.eq.f32.partialorder %v904, %v975
        %vm983 = vcmp.eq.f32.partialorder %v904, %v979
        %vm984 = vcmp.eq.f32.partialorder %v908, %v975
        %vm985 = vcmp.eq.f32.partialorder %v908, %v979
        %vm986 = vcmp.eq.f32.partialorder %v912, %v975
        %vm987 = vcmp.eq.f32.partialorder %v912, %v979
        %vm988 = vcmp.eq.f32.partialorder %v916, %v975
        %vm989 = vcmp.eq.f32.partialorder %v916, %v979
        %vm990 = vcmp.eq.f32.partialorder %v920, %v975
        %vm991 = vcmp.eq.f32.partialorder %v920, %v979
        %vm992 = vcmp.eq.f32.partialorder %v924, %v975
        %vm993 = vcmp.eq.f32.partialorder %v924, %v979
        %vm994 = vcmp.eq.f32.partialorder %v928, %v975
        %vm995 = vcmp.eq.f32.partialorder %v928, %v979
        %vm996 = vcmp.eq.f32.partialorder %v932, %v975
        %vm997 = vcmp.eq.f32.partialorder %v932, %v979
        %vm998 = vcmp.eq.f32.partialorder %v936, %v975
        %vm999 = vcmp.eq.f32.partialorder %v936, %v979
        %vm1000 = vcmp.eq.f32.partialorder %v940, %v975
        %vm1001 = vcmp.eq.f32.partialorder %v940, %v979
        %vm1002 = vcmp.eq.f32.partialorder %v944, %v975
        %vm1003 = vcmp.eq.f32.partialorder %v944, %v979
        %vm1004 = vcmp.eq.f32.partialorder %v948, %v975
        %vm1005 = vcmp.eq.f32.partialorder %v948, %v979
        %vm1006 = vcmp.eq.f32.partialorder %v952, %v975
        %vm1007 = vcmp.eq.f32.partialorder %v952, %v979
        %vm1008 = vcmp.eq.f32.partialorder %v956, %v975
        %vm1009 = vcmp.eq.f32.partialorder %v956, %v979
        %vm1010 = vcmp.eq.f32.partialorder %v960, %v975
        %vm1011 = vcmp.eq.f32.partialorder %v960, %v979
        %v1012 = vsel %vm980, %v866, 1e+10
        %v1013 = vsel %vm981, %v867, 1e+10
        %v1014 = vsel %vm982, %v868, 1e+10
        %v1015 = vsel %vm983, %v869, 1e+10
        %v1016 = vsel %vm984, %v870, 1e+10
        %v1017 = vsel %vm985, %v871, 1e+10
        %v1018 = vsel %vm986, %v872, 1e+10
        %v1019 = vsel %vm987, %v873, 1e+10
        %v1020 = vsel %vm988, %v874, 1e+10
        %v1021 = vsel %vm989, %v875, 1e+10
        %v1022 = vsel %vm990, %v876, 1e+10
        %v1023 = vsel %vm991, %v877, 1e+10
        %v1024 = vsel %vm992, %v878, 1e+10
        %v1025 = vsel %vm993, %v879, 1e+10
        %v1026 = vsel %vm994, %v880, 1e+10
        %v1027 = vsel %vm995, %v881, 1e+10
        %v1028 = vsel %vm996, %v882, 1e+10
        %v1029 = vsel %vm997, %v883, 1e+10
        %v1030 = vsel %vm998, %v884, 1e+10
        %v1031 = vsel %vm999, %v885, 1e+10
        %v1032 = vsel %vm1000, %v886, 1e+10
        %v1033 = vsel %vm1001, %v887, 1e+10
        %v1034 = vsel %vm1002, %v888, 1e+10
        %v1035 = vsel %vm1003, %v889, 1e+10
        %v1036 = vsel %vm1004, %v890, 1e+10
        %v1037 = vsel %vm1005, %v891, 1e+10
        %v1038 = vsel %vm1006, %v892, 1e+10
        %v1039 = vsel %vm1007, %v893, 1e+10
        %v1040 = vsel %vm1008, %v894, 1e+10
        %v1041 = vsel %vm1009, %v895, 1e+10
        %v1042 = vsel %vm1010, %v896, 1e+10
        %v1043 = vsel %vm1011, %v897, 1e+10
        %v1044 = vlaneseq
        %v1045 = vand.u32 %v1044, 127
        %v1046 = vadd.s32 %v1045, 128
        %v1047 = vstv 0
        %v1048 = vadd.s32 %v1047, %v1045
        %v1049 = vadd.s32 %v1047, %v1046
        %v1082 = vand.u32 %v1012, 4294967040
        %v1083 = vand.u32 %v1013, 4294967040
        %v1084 = vand.u32 %v1014, 4294967040
        %v1085 = vand.u32 %v1015, 4294967040
        %v1086 = vand.u32 %v1016, 4294967040
        %v1087 = vand.u32 %v1017, 4294967040
        %v1088 = vand.u32 %v1018, 4294967040
        %v1089 = vand.u32 %v1019, 4294967040
        %v1090 = vand.u32 %v1020, 4294967040
        %v1091 = vand.u32 %v1021, 4294967040
        %v1092 = vand.u32 %v1022, 4294967040
        %v1093 = vand.u32 %v1023, 4294967040
        %v1094 = vand.u32 %v1024, 4294967040
        %v1095 = vand.u32 %v1025, 4294967040
        %v1096 = vand.u32 %v1026, 4294967040
        %v1097 = vand.u32 %v1027, 4294967040
        %v1098 = vand.u32 %v1028, 4294967040
        %v1099 = vand.u32 %v1029, 4294967040
        %v1100 = vand.u32 %v1030, 4294967040
        %v1101 = vand.u32 %v1031, 4294967040
        %v1102 = vand.u32 %v1032, 4294967040
        %v1103 = vand.u32 %v1033, 4294967040
        %v1104 = vand.u32 %v1034, 4294967040
        %v1105 = vand.u32 %v1035, 4294967040
        %v1106 = vand.u32 %v1036, 4294967040
        %v1107 = vand.u32 %v1037, 4294967040
        %v1108 = vand.u32 %v1038, 4294967040
        %v1109 = vand.u32 %v1039, 4294967040
        %v1110 = vand.u32 %v1040, 4294967040
        %v1111 = vand.u32 %v1041, 4294967040
        %v1112 = vand.u32 %v1042, 4294967040
        %v1113 = vand.u32 %v1043, 4294967040
        %v1114 = vor.u32 %v1082, %v1048
        %v1115 = vor.u32 %v1083, %v1049
        %v1116 = vor.u32 %v1084, %v1048
        %v1117 = vor.u32 %v1085, %v1049
        %v1118 = vor.u32 %v1086, %v1048
        %v1119 = vor.u32 %v1087, %v1049
        %v1120 = vor.u32 %v1088, %v1048
        %v1121 = vor.u32 %v1089, %v1049
        %v1122 = vor.u32 %v1090, %v1048
        %v1123 = vor.u32 %v1091, %v1049
        %v1124 = vor.u32 %v1092, %v1048
        %v1125 = vor.u32 %v1093, %v1049
        %v1126 = vor.u32 %v1094, %v1048
        %v1127 = vor.u32 %v1095, %v1049
        %v1128 = vor.u32 %v1096, %v1048
        %v1129 = vor.u32 %v1097, %v1049
        %v1130 = vor.u32 %v1098, %v1048
        %v1131 = vor.u32 %v1099, %v1049
        %v1132 = vor.u32 %v1100, %v1048
        %v1133 = vor.u32 %v1101, %v1049
        %v1134 = vor.u32 %v1102, %v1048
        %v1135 = vor.u32 %v1103, %v1049
        %v1136 = vor.u32 %v1104, %v1048
        %v1137 = vor.u32 %v1105, %v1049
        %v1138 = vor.u32 %v1106, %v1048
        %v1139 = vor.u32 %v1107, %v1049
        %v1140 = vor.u32 %v1108, %v1048
        %v1141 = vor.u32 %v1109, %v1049
        %v1142 = vor.u32 %v1110, %v1048
        %v1143 = vor.u32 %v1111, %v1049
        %v1144 = vor.u32 %v1112, %v1048
        %v1145 = vor.u32 %v1113, %v1049
        %v1178 = vmin.f32 %v1114, %v1115
        %1179 = vmin.xlane.f32.xlu0 %v1178
        %v1180 = vpop.xlane.xlu0 %1179
        %v1181 = vmin.f32 %v1116, %v1117
        %1182 = vmin.xlane.f32.xlu0 %v1181
        %v1183 = vpop.xlane.xlu0 %1182
        %v1184 = vmin.f32 %v1118, %v1119
        %1185 = vmin.xlane.f32.xlu0 %v1184
        %v1186 = vpop.xlane.xlu0 %1185
        %v1187 = vmin.f32 %v1120, %v1121
        %1188 = vmin.xlane.f32.xlu0 %v1187
        %v1189 = vpop.xlane.xlu0 %1188
        %v1190 = vmin.f32 %v1122, %v1123
        %1191 = vmin.xlane.f32.xlu0 %v1190
        %v1192 = vpop.xlane.xlu0 %1191
        %v1193 = vmin.f32 %v1124, %v1125
        %1194 = vmin.xlane.f32.xlu0 %v1193
        %v1195 = vpop.xlane.xlu0 %1194
        %v1196 = vmin.f32 %v1126, %v1127
        %1197 = vmin.xlane.f32.xlu0 %v1196
        %v1198 = vpop.xlane.xlu0 %1197
        %v1199 = vmin.f32 %v1128, %v1129
        %1200 = vmin.xlane.f32.xlu0 %v1199
        %v1201 = vpop.xlane.xlu0 %1200
        %v1202 = vmin.f32 %v1130, %v1131
        %1203 = vmin.xlane.f32.xlu0 %v1202
        %v1204 = vpop.xlane.xlu0 %1203
        %v1205 = vmin.f32 %v1132, %v1133
        %1206 = vmin.xlane.f32.xlu0 %v1205
        %v1207 = vpop.xlane.xlu0 %1206
        %v1208 = vmin.f32 %v1134, %v1135
        %1209 = vmin.xlane.f32.xlu0 %v1208
        %v1210 = vpop.xlane.xlu0 %1209
        %v1211 = vmin.f32 %v1136, %v1137
        %1212 = vmin.xlane.f32.xlu0 %v1211
        %v1213 = vpop.xlane.xlu0 %1212
        %v1214 = vmin.f32 %v1138, %v1139
        %1215 = vmin.xlane.f32.xlu0 %v1214
        %v1216 = vpop.xlane.xlu0 %1215
        %v1217 = vmin.f32 %v1140, %v1141
        %1218 = vmin.xlane.f32.xlu0 %v1217
        %v1219 = vpop.xlane.xlu0 %1218
        %v1220 = vmin.f32 %v1142, %v1143
        %1221 = vmin.xlane.f32.xlu0 %v1220
        %v1222 = vpop.xlane.xlu0 %1221
        %v1223 = vmin.f32 %v1144, %v1145
        %1224 = vmin.xlane.f32.xlu0 %v1223
        %v1225 = vpop.xlane.xlu0 %1224
        %vm1226 = vcmp.eq.f32.partialorder %v1114, %v1180
        %vm1227 = vcmp.eq.f32.partialorder %v1115, %v1180
        %vm1228 = vcmp.eq.f32.partialorder %v1116, %v1183
        %vm1229 = vcmp.eq.f32.partialorder %v1117, %v1183
        %vm1230 = vcmp.eq.f32.partialorder %v1118, %v1186
        %vm1231 = vcmp.eq.f32.partialorder %v1119, %v1186
        %vm1232 = vcmp.eq.f32.partialorder %v1120, %v1189
        %vm1233 = vcmp.eq.f32.partialorder %v1121, %v1189
        %vm1234 = vcmp.eq.f32.partialorder %v1122, %v1192
        %vm1235 = vcmp.eq.f32.partialorder %v1123, %v1192
        %vm1236 = vcmp.eq.f32.partialorder %v1124, %v1195
        %vm1237 = vcmp.eq.f32.partialorder %v1125, %v1195
        %vm1238 = vcmp.eq.f32.partialorder %v1126, %v1198
        %vm1239 = vcmp.eq.f32.partialorder %v1127, %v1198
        %vm1240 = vcmp.eq.f32.partialorder %v1128, %v1201
        %vm1241 = vcmp.eq.f32.partialorder %v1129, %v1201
        %vm1242 = vcmp.eq.f32.partialorder %v1130, %v1204
        %vm1243 = vcmp.eq.f32.partialorder %v1131, %v1204
        %vm1244 = vcmp.eq.f32.partialorder %v1132, %v1207
        %vm1245 = vcmp.eq.f32.partialorder %v1133, %v1207
        %vm1246 = vcmp.eq.f32.partialorder %v1134, %v1210
        %vm1247 = vcmp.eq.f32.partialorder %v1135, %v1210
        %vm1248 = vcmp.eq.f32.partialorder %v1136, %v1213
        %vm1249 = vcmp.eq.f32.partialorder %v1137, %v1213
        %vm1250 = vcmp.eq.f32.partialorder %v1138, %v1216
        %vm1251 = vcmp.eq.f32.partialorder %v1139, %v1216
        %vm1252 = vcmp.eq.f32.partialorder %v1140, %v1219
        %vm1253 = vcmp.eq.f32.partialorder %v1141, %v1219
        %vm1254 = vcmp.eq.f32.partialorder %v1142, %v1222
        %vm1255 = vcmp.eq.f32.partialorder %v1143, %v1222
        %vm1256 = vcmp.eq.f32.partialorder %v1144, %v1225
        %vm1257 = vcmp.eq.f32.partialorder %v1145, %v1225
        %v1258 = vsel %vm1226, 3e+38, %v1114
        %v1259 = vsel %vm1227, 3e+38, %v1115
        %v1260 = vsel %vm1228, 3e+38, %v1116
        %v1261 = vsel %vm1229, 3e+38, %v1117
        %v1262 = vsel %vm1230, 3e+38, %v1118
        %v1263 = vsel %vm1231, 3e+38, %v1119
        %v1264 = vsel %vm1232, 3e+38, %v1120
        %v1265 = vsel %vm1233, 3e+38, %v1121
        %v1266 = vsel %vm1234, 3e+38, %v1122
        %v1267 = vsel %vm1235, 3e+38, %v1123
        %v1268 = vsel %vm1236, 3e+38, %v1124
        %v1269 = vsel %vm1237, 3e+38, %v1125
        %v1270 = vsel %vm1238, 3e+38, %v1126
        %v1271 = vsel %vm1239, 3e+38, %v1127
        %v1272 = vsel %vm1240, 3e+38, %v1128
        %v1273 = vsel %vm1241, 3e+38, %v1129
        %v1274 = vsel %vm1242, 3e+38, %v1130
        %v1275 = vsel %vm1243, 3e+38, %v1131
        %v1276 = vsel %vm1244, 3e+38, %v1132
        %v1277 = vsel %vm1245, 3e+38, %v1133
        %v1278 = vsel %vm1246, 3e+38, %v1134
        %v1279 = vsel %vm1247, 3e+38, %v1135
        %v1280 = vsel %vm1248, 3e+38, %v1136
        %v1281 = vsel %vm1249, 3e+38, %v1137
        %v1282 = vsel %vm1250, 3e+38, %v1138
        %v1283 = vsel %vm1251, 3e+38, %v1139
        %v1284 = vsel %vm1252, 3e+38, %v1140
        %v1285 = vsel %vm1253, 3e+38, %v1141
        %v1286 = vsel %vm1254, 3e+38, %v1142
        %v1287 = vsel %vm1255, 3e+38, %v1143
        %v1288 = vsel %vm1256, 3e+38, %v1144
        %v1289 = vsel %vm1257, 3e+38, %v1145
        %v1290 = vmin.f32 %v1258, %v1259
        %1291 = vmin.xlane.f32.xlu0 %v1290
        %v1292 = vpop.xlane.xlu0 %1291
        %v1293 = vmin.f32 %v1260, %v1261
        %1294 = vmin.xlane.f32.xlu0 %v1293
        %v1295 = vpop.xlane.xlu0 %1294
        %v1296 = vmin.f32 %v1262, %v1263
        %1297 = vmin.xlane.f32.xlu0 %v1296
        %v1298 = vpop.xlane.xlu0 %1297
        %v1299 = vmin.f32 %v1264, %v1265
        %1300 = vmin.xlane.f32.xlu0 %v1299
        %v1301 = vpop.xlane.xlu0 %1300
        %v1302 = vmin.f32 %v1266, %v1267
        %1303 = vmin.xlane.f32.xlu0 %v1302
        %v1304 = vpop.xlane.xlu0 %1303
        %v1305 = vmin.f32 %v1268, %v1269
        %1306 = vmin.xlane.f32.xlu0 %v1305
        %v1307 = vpop.xlane.xlu0 %1306
        %v1308 = vmin.f32 %v1270, %v1271
        %1309 = vmin.xlane.f32.xlu0 %v1308
        %v1310 = vpop.xlane.xlu0 %1309
        %v1311 = vmin.f32 %v1272, %v1273
        %1312 = vmin.xlane.f32.xlu0 %v1311
        %v1313 = vpop.xlane.xlu0 %1312
        %v1314 = vmin.f32 %v1274, %v1275
        %1315 = vmin.xlane.f32.xlu0 %v1314
        %v1316 = vpop.xlane.xlu0 %1315
        %v1317 = vmin.f32 %v1276, %v1277
        %1318 = vmin.xlane.f32.xlu0 %v1317
        %v1319 = vpop.xlane.xlu0 %1318
        %v1320 = vmin.f32 %v1278, %v1279
        %1321 = vmin.xlane.f32.xlu0 %v1320
        %v1322 = vpop.xlane.xlu0 %1321
        %v1323 = vmin.f32 %v1280, %v1281
        %1324 = vmin.xlane.f32.xlu0 %v1323
        %v1325 = vpop.xlane.xlu0 %1324
        %v1326 = vmin.f32 %v1282, %v1283
        %1327 = vmin.xlane.f32.xlu0 %v1326
        %v1328 = vpop.xlane.xlu0 %1327
        %v1329 = vmin.f32 %v1284, %v1285
        %1330 = vmin.xlane.f32.xlu0 %v1329
        %v1331 = vpop.xlane.xlu0 %1330
        %v1332 = vmin.f32 %v1286, %v1287
        %1333 = vmin.xlane.f32.xlu0 %v1332
        %v1334 = vpop.xlane.xlu0 %1333
        %v1335 = vmin.f32 %v1288, %v1289
        %1336 = vmin.xlane.f32.xlu0 %v1335
        %v1337 = vpop.xlane.xlu0 %1336
        %vm1338 = vcmp.eq.f32.partialorder %v1258, %v1292
        %vm1339 = vcmp.eq.f32.partialorder %v1259, %v1292
        %vm1340 = vcmp.eq.f32.partialorder %v1260, %v1295
        %vm1341 = vcmp.eq.f32.partialorder %v1261, %v1295
        %vm1342 = vcmp.eq.f32.partialorder %v1262, %v1298
        %vm1343 = vcmp.eq.f32.partialorder %v1263, %v1298
        %vm1344 = vcmp.eq.f32.partialorder %v1264, %v1301
        %vm1345 = vcmp.eq.f32.partialorder %v1265, %v1301
        %vm1346 = vcmp.eq.f32.partialorder %v1266, %v1304
        %vm1347 = vcmp.eq.f32.partialorder %v1267, %v1304
        %vm1348 = vcmp.eq.f32.partialorder %v1268, %v1307
        %vm1349 = vcmp.eq.f32.partialorder %v1269, %v1307
        %vm1350 = vcmp.eq.f32.partialorder %v1270, %v1310
        %vm1351 = vcmp.eq.f32.partialorder %v1271, %v1310
        %vm1352 = vcmp.eq.f32.partialorder %v1272, %v1313
        %vm1353 = vcmp.eq.f32.partialorder %v1273, %v1313
        %vm1354 = vcmp.eq.f32.partialorder %v1274, %v1316
        %vm1355 = vcmp.eq.f32.partialorder %v1275, %v1316
        %vm1356 = vcmp.eq.f32.partialorder %v1276, %v1319
        %vm1357 = vcmp.eq.f32.partialorder %v1277, %v1319
        %vm1358 = vcmp.eq.f32.partialorder %v1278, %v1322
        %vm1359 = vcmp.eq.f32.partialorder %v1279, %v1322
        %vm1360 = vcmp.eq.f32.partialorder %v1280, %v1325
        %vm1361 = vcmp.eq.f32.partialorder %v1281, %v1325
        %vm1362 = vcmp.eq.f32.partialorder %v1282, %v1328
        %vm1363 = vcmp.eq.f32.partialorder %v1283, %v1328
        %vm1364 = vcmp.eq.f32.partialorder %v1284, %v1331
        %vm1365 = vcmp.eq.f32.partialorder %v1285, %v1331
        %vm1366 = vcmp.eq.f32.partialorder %v1286, %v1334
        %vm1367 = vcmp.eq.f32.partialorder %v1287, %v1334
        %vm1368 = vcmp.eq.f32.partialorder %v1288, %v1337
        %vm1369 = vcmp.eq.f32.partialorder %v1289, %v1337
        %v1370 = vsel %vm1338, 3e+38, %v1258
        %v1371 = vsel %vm1339, 3e+38, %v1259
        %v1372 = vsel %vm1340, 3e+38, %v1260
        %v1373 = vsel %vm1341, 3e+38, %v1261
        %v1374 = vsel %vm1342, 3e+38, %v1262
        %v1375 = vsel %vm1343, 3e+38, %v1263
        %v1376 = vsel %vm1344, 3e+38, %v1264
        %v1377 = vsel %vm1345, 3e+38, %v1265
        %v1378 = vsel %vm1346, 3e+38, %v1266
        %v1379 = vsel %vm1347, 3e+38, %v1267
        %v1380 = vsel %vm1348, 3e+38, %v1268
        %v1381 = vsel %vm1349, 3e+38, %v1269
        %v1382 = vsel %vm1350, 3e+38, %v1270
        %v1383 = vsel %vm1351, 3e+38, %v1271
        %v1384 = vsel %vm1352, 3e+38, %v1272
        %v1385 = vsel %vm1353, 3e+38, %v1273
        %v1386 = vsel %vm1354, 3e+38, %v1274
        %v1387 = vsel %vm1355, 3e+38, %v1275
        %v1388 = vsel %vm1356, 3e+38, %v1276
        %v1389 = vsel %vm1357, 3e+38, %v1277
        %v1390 = vsel %vm1358, 3e+38, %v1278
        %v1391 = vsel %vm1359, 3e+38, %v1279
        %v1392 = vsel %vm1360, 3e+38, %v1280
        %v1393 = vsel %vm1361, 3e+38, %v1281
        %v1394 = vsel %vm1362, 3e+38, %v1282
        %v1395 = vsel %vm1363, 3e+38, %v1283
        %v1396 = vsel %vm1364, 3e+38, %v1284
        %v1397 = vsel %vm1365, 3e+38, %v1285
        %v1398 = vsel %vm1366, 3e+38, %v1286
        %v1399 = vsel %vm1367, 3e+38, %v1287
        %v1400 = vsel %vm1368, 3e+38, %v1288
        %v1401 = vsel %vm1369, 3e+38, %v1289
        %v1402 = vmin.f32 %v1370, %v1371
        %1403 = vmin.xlane.f32.xlu0 %v1402
        %v1404 = vpop.xlane.xlu0 %1403
        %v1405 = vmin.f32 %v1372, %v1373
        %1406 = vmin.xlane.f32.xlu0 %v1405
        %v1407 = vpop.xlane.xlu0 %1406
        %v1408 = vmin.f32 %v1374, %v1375
        %1409 = vmin.xlane.f32.xlu0 %v1408
        %v1410 = vpop.xlane.xlu0 %1409
        %v1411 = vmin.f32 %v1376, %v1377
        %1412 = vmin.xlane.f32.xlu0 %v1411
        %v1413 = vpop.xlane.xlu0 %1412
        %v1414 = vmin.f32 %v1378, %v1379
        %1415 = vmin.xlane.f32.xlu0 %v1414
        %v1416 = vpop.xlane.xlu0 %1415
        %v1417 = vmin.f32 %v1380, %v1381
        %1418 = vmin.xlane.f32.xlu0 %v1417
        %v1419 = vpop.xlane.xlu0 %1418
        %v1420 = vmin.f32 %v1382, %v1383
        %1421 = vmin.xlane.f32.xlu0 %v1420
        %v1422 = vpop.xlane.xlu0 %1421
        %v1423 = vmin.f32 %v1384, %v1385
        %1424 = vmin.xlane.f32.xlu0 %v1423
        %v1425 = vpop.xlane.xlu0 %1424
        %v1426 = vmin.f32 %v1386, %v1387
        %1427 = vmin.xlane.f32.xlu0 %v1426
        %v1428 = vpop.xlane.xlu0 %1427
        %v1429 = vmin.f32 %v1388, %v1389
        %1430 = vmin.xlane.f32.xlu0 %v1429
        %v1431 = vpop.xlane.xlu0 %1430
        %v1432 = vmin.f32 %v1390, %v1391
        %1433 = vmin.xlane.f32.xlu0 %v1432
        %v1434 = vpop.xlane.xlu0 %1433
        %v1435 = vmin.f32 %v1392, %v1393
        %1436 = vmin.xlane.f32.xlu0 %v1435
        %v1437 = vpop.xlane.xlu0 %1436
        %v1438 = vmin.f32 %v1394, %v1395
        %1439 = vmin.xlane.f32.xlu0 %v1438
        %v1440 = vpop.xlane.xlu0 %1439
        %v1441 = vmin.f32 %v1396, %v1397
        %1442 = vmin.xlane.f32.xlu0 %v1441
        %v1443 = vpop.xlane.xlu0 %1442
        %v1444 = vmin.f32 %v1398, %v1399
        %1445 = vmin.xlane.f32.xlu0 %v1444
        %v1446 = vpop.xlane.xlu0 %1445
        %v1447 = vmin.f32 %v1400, %v1401
        %1448 = vmin.xlane.f32.xlu0 %v1447
        %v1449 = vpop.xlane.xlu0 %1448
        %v1450 = vmin.f32 %v1180, 3e+38
        %v1451 = vmin.f32 %v1183, 3e+38
        %v1452 = vmin.f32 %v1186, 3e+38
        %v1453 = vmin.f32 %v1189, 3e+38
        %v1454 = vmin.f32 %v1192, 3e+38
        %v1455 = vmin.f32 %v1195, 3e+38
        %v1456 = vmin.f32 %v1198, 3e+38
        %v1457 = vmin.f32 %v1201, 3e+38
        %v1458 = vmin.f32 %v1204, 3e+38
        %v1459 = vmin.f32 %v1207, 3e+38
        %v1460 = vmin.f32 %v1210, 3e+38
        %v1461 = vmin.f32 %v1213, 3e+38
        %v1462 = vmin.f32 %v1216, 3e+38
        %v1463 = vmin.f32 %v1219, 3e+38
        %v1464 = vmin.f32 %v1222, 3e+38
        %v1465 = vmin.f32 %v1225, 3e+38
        %v1466 = vmax.f32 %v1180, 3e+38
        %v1467 = vmax.f32 %v1183, 3e+38
        %v1468 = vmax.f32 %v1186, 3e+38
        %v1469 = vmax.f32 %v1189, 3e+38
        %v1470 = vmax.f32 %v1192, 3e+38
        %v1471 = vmax.f32 %v1195, 3e+38
        %v1472 = vmax.f32 %v1198, 3e+38
        %v1473 = vmax.f32 %v1201, 3e+38
        %v1474 = vmax.f32 %v1204, 3e+38
        %v1475 = vmax.f32 %v1207, 3e+38
        %v1476 = vmax.f32 %v1210, 3e+38
        %v1477 = vmax.f32 %v1213, 3e+38
        %v1478 = vmax.f32 %v1216, 3e+38
        %v1479 = vmax.f32 %v1219, 3e+38
        %v1480 = vmax.f32 %v1222, 3e+38
        %v1481 = vmax.f32 %v1225, 3e+38
        %v1482 = vmin.f32 %v1292, %v1466
        %v1483 = vmin.f32 %v1295, %v1467
        %v1484 = vmin.f32 %v1298, %v1468
        %v1485 = vmin.f32 %v1301, %v1469
        %v1486 = vmin.f32 %v1304, %v1470
        %v1487 = vmin.f32 %v1307, %v1471
        %v1488 = vmin.f32 %v1310, %v1472
        %v1489 = vmin.f32 %v1313, %v1473
        %v1490 = vmin.f32 %v1316, %v1474
        %v1491 = vmin.f32 %v1319, %v1475
        %v1492 = vmin.f32 %v1322, %v1476
        %v1493 = vmin.f32 %v1325, %v1477
        %v1494 = vmin.f32 %v1328, %v1478
        %v1495 = vmin.f32 %v1331, %v1479
        %v1496 = vmin.f32 %v1334, %v1480
        %v1497 = vmin.f32 %v1337, %v1481
        %v1498 = vmin.f32 %v1482, 3e+38
        %v1499 = vmin.f32 %v1483, 3e+38
        %v1500 = vmin.f32 %v1484, 3e+38
        %v1501 = vmin.f32 %v1485, 3e+38
        %v1502 = vmin.f32 %v1486, 3e+38
        %v1503 = vmin.f32 %v1487, 3e+38
        %v1504 = vmin.f32 %v1488, 3e+38
        %v1505 = vmin.f32 %v1489, 3e+38
        %v1506 = vmin.f32 %v1490, 3e+38
        %v1507 = vmin.f32 %v1491, 3e+38
        %v1508 = vmin.f32 %v1492, 3e+38
        %v1509 = vmin.f32 %v1493, 3e+38
        %v1510 = vmin.f32 %v1494, 3e+38
        %v1511 = vmin.f32 %v1495, 3e+38
        %v1512 = vmin.f32 %v1496, 3e+38
        %v1513 = vmin.f32 %v1497, 3e+38
        %v1514 = vmax.f32 %v1292, 3e+38
        %v1515 = vmax.f32 %v1295, 3e+38
        %v1516 = vmax.f32 %v1298, 3e+38
        %v1517 = vmax.f32 %v1301, 3e+38
        %v1518 = vmax.f32 %v1304, 3e+38
        %v1519 = vmax.f32 %v1307, 3e+38
        %v1520 = vmax.f32 %v1310, 3e+38
        %v1521 = vmax.f32 %v1313, 3e+38
        %v1522 = vmax.f32 %v1316, 3e+38
        %v1523 = vmax.f32 %v1319, 3e+38
        %v1524 = vmax.f32 %v1322, 3e+38
        %v1525 = vmax.f32 %v1325, 3e+38
        %v1526 = vmax.f32 %v1328, 3e+38
        %v1527 = vmax.f32 %v1331, 3e+38
        %v1528 = vmax.f32 %v1334, 3e+38
        %v1529 = vmax.f32 %v1337, 3e+38
        %v1530 = vmin.f32 %v1404, %v1514
        %v1531 = vmin.f32 %v1407, %v1515
        %v1532 = vmin.f32 %v1410, %v1516
        %v1533 = vmin.f32 %v1413, %v1517
        %v1534 = vmin.f32 %v1416, %v1518
        %v1535 = vmin.f32 %v1419, %v1519
        %v1536 = vmin.f32 %v1422, %v1520
        %v1537 = vmin.f32 %v1425, %v1521
        %v1538 = vmin.f32 %v1428, %v1522
        %v1539 = vmin.f32 %v1431, %v1523
        %v1540 = vmin.f32 %v1434, %v1524
        %v1541 = vmin.f32 %v1437, %v1525
        %v1542 = vmin.f32 %v1440, %v1526
        %v1543 = vmin.f32 %v1443, %v1527
        %v1544 = vmin.f32 %v1446, %v1528
        %v1545 = vmin.f32 %v1449, %v1529
        %v1546 = vmin.f32 %v1530, %v1466
        %v1547 = vmin.f32 %v1531, %v1467
        %v1548 = vmin.f32 %v1532, %v1468
        %v1549 = vmin.f32 %v1533, %v1469
        %v1550 = vmin.f32 %v1534, %v1470
        %v1551 = vmin.f32 %v1535, %v1471
        %v1552 = vmin.f32 %v1536, %v1472
        %v1553 = vmin.f32 %v1537, %v1473
        %v1554 = vmin.f32 %v1538, %v1474
        %v1555 = vmin.f32 %v1539, %v1475
        %v1556 = vmin.f32 %v1540, %v1476
        %v1557 = vmin.f32 %v1541, %v1477
        %v1558 = vmin.f32 %v1542, %v1478
        %v1559 = vmin.f32 %v1543, %v1479
        %v1560 = vmin.f32 %v1544, %v1480
        %v1561 = vmin.f32 %v1545, %v1481
        %v1562 = vmin.f32 %v1546, 3e+38
        %v1563 = vmin.f32 %v1547, 3e+38
        %v1564 = vmin.f32 %v1548, 3e+38
        %v1565 = vmin.f32 %v1549, 3e+38
        %v1566 = vmin.f32 %v1550, 3e+38
        %v1567 = vmin.f32 %v1551, 3e+38
        %v1568 = vmin.f32 %v1552, 3e+38
        %v1569 = vmin.f32 %v1553, 3e+38
        %v1570 = vmin.f32 %v1554, 3e+38
        %v1571 = vmin.f32 %v1555, 3e+38
        %v1572 = vmin.f32 %v1556, 3e+38
        %v1573 = vmin.f32 %v1557, 3e+38
        %v1574 = vmin.f32 %v1558, 3e+38
        %v1575 = vmin.f32 %v1559, 3e+38
        %v1576 = vmin.f32 %v1560, 3e+38
        %v1577 = vmin.f32 %v1561, 3e+38
        %v1594 = vand.u32 %v1450, 255
        %v1595 = vand.u32 %v1451, 255
        %v1596 = vand.u32 %v1452, 255
        %v1597 = vand.u32 %v1453, 255
        %v1598 = vand.u32 %v1454, 255
        %v1599 = vand.u32 %v1455, 255
        %v1600 = vand.u32 %v1456, 255
        %v1601 = vand.u32 %v1457, 255
        %v1602 = vand.u32 %v1458, 255
        %v1603 = vand.u32 %v1459, 255
        %v1604 = vand.u32 %v1460, 255
        %v1605 = vand.u32 %v1461, 255
        %v1606 = vand.u32 %v1462, 255
        %v1607 = vand.u32 %v1463, 255
        %v1608 = vand.u32 %v1464, 255
        %v1609 = vand.u32 %v1465, 255
        %v1610 = vand.u32 %v1450, 4294967040
        %v1611 = vand.u32 %v1451, 4294967040
        %v1612 = vand.u32 %v1452, 4294967040
        %v1613 = vand.u32 %v1453, 4294967040
        %v1614 = vand.u32 %v1454, 4294967040
        %v1615 = vand.u32 %v1455, 4294967040
        %v1616 = vand.u32 %v1456, 4294967040
        %v1617 = vand.u32 %v1457, 4294967040
        %v1618 = vand.u32 %v1458, 4294967040
        %v1619 = vand.u32 %v1459, 4294967040
        %v1620 = vand.u32 %v1460, 4294967040
        %v1621 = vand.u32 %v1461, 4294967040
        %v1622 = vand.u32 %v1462, 4294967040
        %v1623 = vand.u32 %v1463, 4294967040
        %v1624 = vand.u32 %v1464, 4294967040
        %v1625 = vand.u32 %v1465, 4294967040
        %v1642 = vadd.f32 %v1610, 1e-08
        %v1643 = vadd.f32 %v1611, 1e-08
        %v1644 = vadd.f32 %v1612, 1e-08
        %v1645 = vadd.f32 %v1613, 1e-08
        %v1646 = vadd.f32 %v1614, 1e-08
        %v1647 = vadd.f32 %v1615, 1e-08
        %v1648 = vadd.f32 %v1616, 1e-08
        %v1649 = vadd.f32 %v1617, 1e-08
        %v1650 = vadd.f32 %v1618, 1e-08
        %v1651 = vadd.f32 %v1619, 1e-08
        %v1652 = vadd.f32 %v1620, 1e-08
        %v1653 = vadd.f32 %v1621, 1e-08
        %v1654 = vadd.f32 %v1622, 1e-08
        %v1655 = vadd.f32 %v1623, 1e-08
        %v1656 = vadd.f32 %v1624, 1e-08
        %v1657 = vadd.f32 %v1625, 1e-08
        %v1658 = vrcp.pop %v1642
        %v1659 = vrcp.pop %v1643
        %v1660 = vrcp.pop %v1644
        %v1661 = vrcp.pop %v1645
        %v1662 = vrcp.pop %v1646
        %v1663 = vrcp.pop %v1647
        %v1664 = vrcp.pop %v1648
        %v1665 = vrcp.pop %v1649
        %v1666 = vrcp.pop %v1650
        %v1667 = vrcp.pop %v1651
        %v1668 = vrcp.pop %v1652
        %v1669 = vrcp.pop %v1653
        %v1670 = vrcp.pop %v1654
        %v1671 = vrcp.pop %v1655
        %v1672 = vrcp.pop %v1656
        %v1673 = vrcp.pop %v1657
        %v1690 = vand.u32 %v1498, 255
        %v1691 = vand.u32 %v1499, 255
        %v1692 = vand.u32 %v1500, 255
        %v1693 = vand.u32 %v1501, 255
        %v1694 = vand.u32 %v1502, 255
        %v1695 = vand.u32 %v1503, 255
        %v1696 = vand.u32 %v1504, 255
        %v1697 = vand.u32 %v1505, 255
        %v1698 = vand.u32 %v1506, 255
        %v1699 = vand.u32 %v1507, 255
        %v1700 = vand.u32 %v1508, 255
        %v1701 = vand.u32 %v1509, 255
        %v1702 = vand.u32 %v1510, 255
        %v1703 = vand.u32 %v1511, 255
        %v1704 = vand.u32 %v1512, 255
        %v1705 = vand.u32 %v1513, 255
        %v1706 = vand.u32 %v1498, 4294967040
        %v1707 = vand.u32 %v1499, 4294967040
        %v1708 = vand.u32 %v1500, 4294967040
        %v1709 = vand.u32 %v1501, 4294967040
        %v1710 = vand.u32 %v1502, 4294967040
        %v1711 = vand.u32 %v1503, 4294967040
        %v1712 = vand.u32 %v1504, 4294967040
        %v1713 = vand.u32 %v1505, 4294967040
        %v1714 = vand.u32 %v1506, 4294967040
        %v1715 = vand.u32 %v1507, 4294967040
        %v1716 = vand.u32 %v1508, 4294967040
        %v1717 = vand.u32 %v1509, 4294967040
        %v1718 = vand.u32 %v1510, 4294967040
        %v1719 = vand.u32 %v1511, 4294967040
        %v1720 = vand.u32 %v1512, 4294967040
        %v1721 = vand.u32 %v1513, 4294967040
        %v1738 = vadd.f32 %v1706, 1e-08
        %v1739 = vadd.f32 %v1707, 1e-08
        %v1740 = vadd.f32 %v1708, 1e-08
        %v1741 = vadd.f32 %v1709, 1e-08
        %v1742 = vadd.f32 %v1710, 1e-08
        %v1743 = vadd.f32 %v1711, 1e-08
        %v1744 = vadd.f32 %v1712, 1e-08
        %v1745 = vadd.f32 %v1713, 1e-08
        %v1746 = vadd.f32 %v1714, 1e-08
        %v1747 = vadd.f32 %v1715, 1e-08
        %v1748 = vadd.f32 %v1716, 1e-08
        %v1749 = vadd.f32 %v1717, 1e-08
        %v1750 = vadd.f32 %v1718, 1e-08
        %v1751 = vadd.f32 %v1719, 1e-08
        %v1752 = vadd.f32 %v1720, 1e-08
        %v1753 = vadd.f32 %v1721, 1e-08
        %v1754 = vrcp.pop %v1738
        %v1755 = vrcp.pop %v1739
        %v1756 = vrcp.pop %v1740
        %v1757 = vrcp.pop %v1741
        %v1758 = vrcp.pop %v1742
        %v1759 = vrcp.pop %v1743
        %v1760 = vrcp.pop %v1744
        %v1761 = vrcp.pop %v1745
        %v1762 = vrcp.pop %v1746
        %v1763 = vrcp.pop %v1747
        %v1764 = vrcp.pop %v1748
        %v1765 = vrcp.pop %v1749
        %v1766 = vrcp.pop %v1750
        %v1767 = vrcp.pop %v1751
        %v1768 = vrcp.pop %v1752
        %v1769 = vrcp.pop %v1753
        %v1786 = vand.u32 %v1562, 255
        %v1787 = vand.u32 %v1563, 255
        %v1788 = vand.u32 %v1564, 255
        %v1789 = vand.u32 %v1565, 255
        %v1790 = vand.u32 %v1566, 255
        %v1791 = vand.u32 %v1567, 255
        %v1792 = vand.u32 %v1568, 255
        %v1793 = vand.u32 %v1569, 255
        %v1794 = vand.u32 %v1570, 255
        %v1795 = vand.u32 %v1571, 255
        %v1796 = vand.u32 %v1572, 255
        %v1797 = vand.u32 %v1573, 255
        %v1798 = vand.u32 %v1574, 255
        %v1799 = vand.u32 %v1575, 255
        %v1800 = vand.u32 %v1576, 255
        %v1801 = vand.u32 %v1577, 255
        %v1802 = vand.u32 %v1562, 4294967040
        %v1803 = vand.u32 %v1563, 4294967040
        %v1804 = vand.u32 %v1564, 4294967040
        %v1805 = vand.u32 %v1565, 4294967040
        %v1806 = vand.u32 %v1566, 4294967040
        %v1807 = vand.u32 %v1567, 4294967040
        %v1808 = vand.u32 %v1568, 4294967040
        %v1809 = vand.u32 %v1569, 4294967040
        %v1810 = vand.u32 %v1570, 4294967040
        %v1811 = vand.u32 %v1571, 4294967040
        %v1812 = vand.u32 %v1572, 4294967040
        %v1813 = vand.u32 %v1573, 4294967040
        %v1814 = vand.u32 %v1574, 4294967040
        %v1815 = vand.u32 %v1575, 4294967040
        %v1816 = vand.u32 %v1576, 4294967040
        %v1817 = vand.u32 %v1577, 4294967040
        %v1834 = vadd.f32 %v1802, 1e-08
        %v1835 = vadd.f32 %v1803, 1e-08
        %v1836 = vadd.f32 %v1804, 1e-08
        %v1837 = vadd.f32 %v1805, 1e-08
        %v1838 = vadd.f32 %v1806, 1e-08
        %v1839 = vadd.f32 %v1807, 1e-08
        %v1840 = vadd.f32 %v1808, 1e-08
        %v1841 = vadd.f32 %v1809, 1e-08
        %v1842 = vadd.f32 %v1810, 1e-08
        %v1843 = vadd.f32 %v1811, 1e-08
        %v1844 = vadd.f32 %v1812, 1e-08
        %v1845 = vadd.f32 %v1813, 1e-08
        %v1846 = vadd.f32 %v1814, 1e-08
        %v1847 = vadd.f32 %v1815, 1e-08
        %v1848 = vadd.f32 %v1816, 1e-08
        %v1849 = vadd.f32 %v1817, 1e-08
        %v1850 = vrcp.pop %v1834
        %v1851 = vrcp.pop %v1835
        %v1852 = vrcp.pop %v1836
        %v1853 = vrcp.pop %v1837
        %v1854 = vrcp.pop %v1838
        %v1855 = vrcp.pop %v1839
        %v1856 = vrcp.pop %v1840
        %v1857 = vrcp.pop %v1841
        %v1858 = vrcp.pop %v1842
        %v1859 = vrcp.pop %v1843
        %v1860 = vrcp.pop %v1844
        %v1861 = vrcp.pop %v1845
        %v1862 = vrcp.pop %v1846
        %v1863 = vrcp.pop %v1847
        %v1864 = vrcp.pop %v1848
        %v1865 = vrcp.pop %v1849
        %v1866 = vadd.f32 %v1658, %v1754
        %v1867 = vadd.f32 %v1659, %v1755
        %v1868 = vadd.f32 %v1660, %v1756
        %v1869 = vadd.f32 %v1661, %v1757
        %v1870 = vadd.f32 %v1662, %v1758
        %v1871 = vadd.f32 %v1663, %v1759
        %v1872 = vadd.f32 %v1664, %v1760
        %v1873 = vadd.f32 %v1665, %v1761
        %v1874 = vadd.f32 %v1666, %v1762
        %v1875 = vadd.f32 %v1667, %v1763
        %v1876 = vadd.f32 %v1668, %v1764
        %v1877 = vadd.f32 %v1669, %v1765
        %v1878 = vadd.f32 %v1670, %v1766
        %v1879 = vadd.f32 %v1671, %v1767
        %v1880 = vadd.f32 %v1672, %v1768
        %v1881 = vadd.f32 %v1673, %v1769
        %v1882 = vadd.f32 %v1866, %v1850
        %v1883 = vadd.f32 %v1867, %v1851
        %v1884 = vadd.f32 %v1868, %v1852
        %v1885 = vadd.f32 %v1869, %v1853
        %v1886 = vadd.f32 %v1870, %v1854
        %v1887 = vadd.f32 %v1871, %v1855
        %v1888 = vadd.f32 %v1872, %v1856
        %v1889 = vadd.f32 %v1873, %v1857
        %v1890 = vadd.f32 %v1874, %v1858
        %v1891 = vadd.f32 %v1875, %v1859
        %v1892 = vadd.f32 %v1876, %v1860
        %v1893 = vadd.f32 %v1877, %v1861
        %v1894 = vadd.f32 %v1878, %v1862
        %v1895 = vadd.f32 %v1879, %v1863
        %v1896 = vadd.f32 %v1880, %v1864
        %v1897 = vadd.f32 %v1881, %v1865
        %v1898 = vrcp.pop %v1882
        %v1899 = vrcp.pop %v1883
        %v1900 = vrcp.pop %v1884
        %v1901 = vrcp.pop %v1885
        %v1902 = vrcp.pop %v1886
        %v1903 = vrcp.pop %v1887
        %v1904 = vrcp.pop %v1888
        %v1905 = vrcp.pop %v1889
        %v1906 = vrcp.pop %v1890
        %v1907 = vrcp.pop %v1891
        %v1908 = vrcp.pop %v1892
        %v1909 = vrcp.pop %v1893
        %v1910 = vrcp.pop %v1894
        %v1911 = vrcp.pop %v1895
        %v1912 = vrcp.pop %v1896
        %v1913 = vrcp.pop %v1897
        %v1914 = vmul.f32 %v1658, %v1898
        %v1915 = vmul.f32 %v1659, %v1899
        %v1916 = vmul.f32 %v1660, %v1900
        %v1917 = vmul.f32 %v1661, %v1901
        %v1918 = vmul.f32 %v1662, %v1902
        %v1919 = vmul.f32 %v1663, %v1903
        %v1920 = vmul.f32 %v1664, %v1904
        %v1921 = vmul.f32 %v1665, %v1905
        %v1922 = vmul.f32 %v1666, %v1906
        %v1923 = vmul.f32 %v1667, %v1907
        %v1924 = vmul.f32 %v1668, %v1908
        %v1925 = vmul.f32 %v1669, %v1909
        %v1926 = vmul.f32 %v1670, %v1910
        %v1927 = vmul.f32 %v1671, %v1911
        %v1928 = vmul.f32 %v1672, %v1912
        %v1929 = vmul.f32 %v1673, %v1913
        %v1930 = vmul.f32 %v1754, %v1898
        %v1931 = vmul.f32 %v1755, %v1899
        %v1932 = vmul.f32 %v1756, %v1900
        %v1933 = vmul.f32 %v1757, %v1901
        %v1934 = vmul.f32 %v1758, %v1902
        %v1935 = vmul.f32 %v1759, %v1903
        %v1936 = vmul.f32 %v1760, %v1904
        %v1937 = vmul.f32 %v1761, %v1905
        %v1938 = vmul.f32 %v1762, %v1906
        %v1939 = vmul.f32 %v1763, %v1907
        %v1940 = vmul.f32 %v1764, %v1908
        %v1941 = vmul.f32 %v1765, %v1909
        %v1942 = vmul.f32 %v1766, %v1910
        %v1943 = vmul.f32 %v1767, %v1911
        %v1944 = vmul.f32 %v1768, %v1912
        %v1945 = vmul.f32 %v1769, %v1913
        %v1946 = vmul.f32 %v1850, %v1898
        %v1947 = vmul.f32 %v1851, %v1899
        %v1948 = vmul.f32 %v1852, %v1900
        %v1949 = vmul.f32 %v1853, %v1901
        %v1950 = vmul.f32 %v1854, %v1902
        %v1951 = vmul.f32 %v1855, %v1903
        %v1952 = vmul.f32 %v1856, %v1904
        %v1953 = vmul.f32 %v1857, %v1905
        %v1954 = vmul.f32 %v1858, %v1906
        %v1955 = vmul.f32 %v1859, %v1907
        %v1956 = vmul.f32 %v1860, %v1908
        %v1957 = vmul.f32 %v1861, %v1909
        %v1958 = vmul.f32 %v1862, %v1910
        %v1959 = vmul.f32 %v1863, %v1911
        %v1960 = vmul.f32 %v1864, %v1912
        %v1961 = vmul.f32 %v1865, %v1913
        %vm1962 = vcmp.eq.s32.totalorder %v1048, %v1594
        %vm1963 = vcmp.eq.s32.totalorder %v1049, %v1594
        %vm1964 = vcmp.eq.s32.totalorder %v1048, %v1595
        %vm1965 = vcmp.eq.s32.totalorder %v1049, %v1595
        %vm1966 = vcmp.eq.s32.totalorder %v1048, %v1596
        %vm1967 = vcmp.eq.s32.totalorder %v1049, %v1596
        %vm1968 = vcmp.eq.s32.totalorder %v1048, %v1597
        %vm1969 = vcmp.eq.s32.totalorder %v1049, %v1597
        %vm1970 = vcmp.eq.s32.totalorder %v1048, %v1598
        %vm1971 = vcmp.eq.s32.totalorder %v1049, %v1598
        %vm1972 = vcmp.eq.s32.totalorder %v1048, %v1599
        %vm1973 = vcmp.eq.s32.totalorder %v1049, %v1599
        %vm1974 = vcmp.eq.s32.totalorder %v1048, %v1600
        %vm1975 = vcmp.eq.s32.totalorder %v1049, %v1600
        %vm1976 = vcmp.eq.s32.totalorder %v1048, %v1601
        %vm1977 = vcmp.eq.s32.totalorder %v1049, %v1601
        %vm1978 = vcmp.eq.s32.totalorder %v1048, %v1602
        %vm1979 = vcmp.eq.s32.totalorder %v1049, %v1602
        %vm1980 = vcmp.eq.s32.totalorder %v1048, %v1603
        %vm1981 = vcmp.eq.s32.totalorder %v1049, %v1603
        %vm1982 = vcmp.eq.s32.totalorder %v1048, %v1604
        %vm1983 = vcmp.eq.s32.totalorder %v1049, %v1604
        %vm1984 = vcmp.eq.s32.totalorder %v1048, %v1605
        %vm1985 = vcmp.eq.s32.totalorder %v1049, %v1605
        %vm1986 = vcmp.eq.s32.totalorder %v1048, %v1606
        %vm1987 = vcmp.eq.s32.totalorder %v1049, %v1606
        %vm1988 = vcmp.eq.s32.totalorder %v1048, %v1607
        %vm1989 = vcmp.eq.s32.totalorder %v1049, %v1607
        %vm1990 = vcmp.eq.s32.totalorder %v1048, %v1608
        %vm1991 = vcmp.eq.s32.totalorder %v1049, %v1608
        %vm1992 = vcmp.eq.s32.totalorder %v1048, %v1609
        %vm1993 = vcmp.eq.s32.totalorder %v1049, %v1609
        %v1994 = vsel %vm1962, %v1914, 0.0
        %v1995 = vsel %vm1963, %v1914, 0.0
        %v1996 = vsel %vm1964, %v1915, 0.0
        %v1997 = vsel %vm1965, %v1915, 0.0
        %v1998 = vsel %vm1966, %v1916, 0.0
        %v1999 = vsel %vm1967, %v1916, 0.0
        %v2000 = vsel %vm1968, %v1917, 0.0
        %v2001 = vsel %vm1969, %v1917, 0.0
        %v2002 = vsel %vm1970, %v1918, 0.0
        %v2003 = vsel %vm1971, %v1918, 0.0
        %v2004 = vsel %vm1972, %v1919, 0.0
        %v2005 = vsel %vm1973, %v1919, 0.0
        %v2006 = vsel %vm1974, %v1920, 0.0
        %v2007 = vsel %vm1975, %v1920, 0.0
        %v2008 = vsel %vm1976, %v1921, 0.0
        %v2009 = vsel %vm1977, %v1921, 0.0
        %v2010 = vsel %vm1978, %v1922, 0.0
        %v2011 = vsel %vm1979, %v1922, 0.0
        %v2012 = vsel %vm1980, %v1923, 0.0
        %v2013 = vsel %vm1981, %v1923, 0.0
        %v2014 = vsel %vm1982, %v1924, 0.0
        %v2015 = vsel %vm1983, %v1924, 0.0
        %v2016 = vsel %vm1984, %v1925, 0.0
        %v2017 = vsel %vm1985, %v1925, 0.0
        %v2018 = vsel %vm1986, %v1926, 0.0
        %v2019 = vsel %vm1987, %v1926, 0.0
        %v2020 = vsel %vm1988, %v1927, 0.0
        %v2021 = vsel %vm1989, %v1927, 0.0
        %v2022 = vsel %vm1990, %v1928, 0.0
        %v2023 = vsel %vm1991, %v1928, 0.0
        %v2024 = vsel %vm1992, %v1929, 0.0
        %v2025 = vsel %vm1993, %v1929, 0.0
        %vm2026 = vcmp.eq.s32.totalorder %v1048, %v1690
        %vm2027 = vcmp.eq.s32.totalorder %v1049, %v1690
        %vm2028 = vcmp.eq.s32.totalorder %v1048, %v1691
        %vm2029 = vcmp.eq.s32.totalorder %v1049, %v1691
        %vm2030 = vcmp.eq.s32.totalorder %v1048, %v1692
        %vm2031 = vcmp.eq.s32.totalorder %v1049, %v1692
        %vm2032 = vcmp.eq.s32.totalorder %v1048, %v1693
        %vm2033 = vcmp.eq.s32.totalorder %v1049, %v1693
        %vm2034 = vcmp.eq.s32.totalorder %v1048, %v1694
        %vm2035 = vcmp.eq.s32.totalorder %v1049, %v1694
        %vm2036 = vcmp.eq.s32.totalorder %v1048, %v1695
        %vm2037 = vcmp.eq.s32.totalorder %v1049, %v1695
        %vm2038 = vcmp.eq.s32.totalorder %v1048, %v1696
        %vm2039 = vcmp.eq.s32.totalorder %v1049, %v1696
        %vm2040 = vcmp.eq.s32.totalorder %v1048, %v1697
        %vm2041 = vcmp.eq.s32.totalorder %v1049, %v1697
        %vm2042 = vcmp.eq.s32.totalorder %v1048, %v1698
        %vm2043 = vcmp.eq.s32.totalorder %v1049, %v1698
        %vm2044 = vcmp.eq.s32.totalorder %v1048, %v1699
        %vm2045 = vcmp.eq.s32.totalorder %v1049, %v1699
        %vm2046 = vcmp.eq.s32.totalorder %v1048, %v1700
        %vm2047 = vcmp.eq.s32.totalorder %v1049, %v1700
        %vm2048 = vcmp.eq.s32.totalorder %v1048, %v1701
        %vm2049 = vcmp.eq.s32.totalorder %v1049, %v1701
        %vm2050 = vcmp.eq.s32.totalorder %v1048, %v1702
        %vm2051 = vcmp.eq.s32.totalorder %v1049, %v1702
        %vm2052 = vcmp.eq.s32.totalorder %v1048, %v1703
        %vm2053 = vcmp.eq.s32.totalorder %v1049, %v1703
        %vm2054 = vcmp.eq.s32.totalorder %v1048, %v1704
        %vm2055 = vcmp.eq.s32.totalorder %v1049, %v1704
        %vm2056 = vcmp.eq.s32.totalorder %v1048, %v1705
        %vm2057 = vcmp.eq.s32.totalorder %v1049, %v1705
        %v2058 = vsel %vm2026, %v1930, 0.0
        %v2059 = vsel %vm2027, %v1930, 0.0
        %v2060 = vsel %vm2028, %v1931, 0.0
        %v2061 = vsel %vm2029, %v1931, 0.0
        %v2062 = vsel %vm2030, %v1932, 0.0
        %v2063 = vsel %vm2031, %v1932, 0.0
        %v2064 = vsel %vm2032, %v1933, 0.0
        %v2065 = vsel %vm2033, %v1933, 0.0
        %v2066 = vsel %vm2034, %v1934, 0.0
        %v2067 = vsel %vm2035, %v1934, 0.0
        %v2068 = vsel %vm2036, %v1935, 0.0
        %v2069 = vsel %vm2037, %v1935, 0.0
        %v2070 = vsel %vm2038, %v1936, 0.0
        %v2071 = vsel %vm2039, %v1936, 0.0
        %v2072 = vsel %vm2040, %v1937, 0.0
        %v2073 = vsel %vm2041, %v1937, 0.0
        %v2074 = vsel %vm2042, %v1938, 0.0
        %v2075 = vsel %vm2043, %v1938, 0.0
        %v2076 = vsel %vm2044, %v1939, 0.0
        %v2077 = vsel %vm2045, %v1939, 0.0
        %v2078 = vsel %vm2046, %v1940, 0.0
        %v2079 = vsel %vm2047, %v1940, 0.0
        %v2080 = vsel %vm2048, %v1941, 0.0
        %v2081 = vsel %vm2049, %v1941, 0.0
        %v2082 = vsel %vm2050, %v1942, 0.0
        %v2083 = vsel %vm2051, %v1942, 0.0
        %v2084 = vsel %vm2052, %v1943, 0.0
        %v2085 = vsel %vm2053, %v1943, 0.0
        %v2086 = vsel %vm2054, %v1944, 0.0
        %v2087 = vsel %vm2055, %v1944, 0.0
        %v2088 = vsel %vm2056, %v1945, 0.0
        %v2089 = vsel %vm2057, %v1945, 0.0
        %v2090 = vadd.f32 %v1994, %v2058
        %v2091 = vadd.f32 %v1995, %v2059
        %v2092 = vadd.f32 %v1996, %v2060
        %v2093 = vadd.f32 %v1997, %v2061
        %v2094 = vadd.f32 %v1998, %v2062
        %v2095 = vadd.f32 %v1999, %v2063
        %v2096 = vadd.f32 %v2000, %v2064
        %v2097 = vadd.f32 %v2001, %v2065
        %v2098 = vadd.f32 %v2002, %v2066
        %v2099 = vadd.f32 %v2003, %v2067
        %v2100 = vadd.f32 %v2004, %v2068
        %v2101 = vadd.f32 %v2005, %v2069
        %v2102 = vadd.f32 %v2006, %v2070
        %v2103 = vadd.f32 %v2007, %v2071
        %v2104 = vadd.f32 %v2008, %v2072
        %v2105 = vadd.f32 %v2009, %v2073
        %v2106 = vadd.f32 %v2010, %v2074
        %v2107 = vadd.f32 %v2011, %v2075
        %v2108 = vadd.f32 %v2012, %v2076
        %v2109 = vadd.f32 %v2013, %v2077
        %v2110 = vadd.f32 %v2014, %v2078
        %v2111 = vadd.f32 %v2015, %v2079
        %v2112 = vadd.f32 %v2016, %v2080
        %v2113 = vadd.f32 %v2017, %v2081
        %v2114 = vadd.f32 %v2018, %v2082
        %v2115 = vadd.f32 %v2019, %v2083
        %v2116 = vadd.f32 %v2020, %v2084
        %v2117 = vadd.f32 %v2021, %v2085
        %v2118 = vadd.f32 %v2022, %v2086
        %v2119 = vadd.f32 %v2023, %v2087
        %v2120 = vadd.f32 %v2024, %v2088
        %v2121 = vadd.f32 %v2025, %v2089
        %vm2122 = vcmp.eq.s32.totalorder %v1048, %v1786
        %vm2123 = vcmp.eq.s32.totalorder %v1049, %v1786
        %vm2124 = vcmp.eq.s32.totalorder %v1048, %v1787
        %vm2125 = vcmp.eq.s32.totalorder %v1049, %v1787
        %vm2126 = vcmp.eq.s32.totalorder %v1048, %v1788
        %vm2127 = vcmp.eq.s32.totalorder %v1049, %v1788
        %vm2128 = vcmp.eq.s32.totalorder %v1048, %v1789
        %vm2129 = vcmp.eq.s32.totalorder %v1049, %v1789
        %vm2130 = vcmp.eq.s32.totalorder %v1048, %v1790
        %vm2131 = vcmp.eq.s32.totalorder %v1049, %v1790
        %vm2132 = vcmp.eq.s32.totalorder %v1048, %v1791
        %vm2133 = vcmp.eq.s32.totalorder %v1049, %v1791
        %vm2134 = vcmp.eq.s32.totalorder %v1048, %v1792
        %vm2135 = vcmp.eq.s32.totalorder %v1049, %v1792
        %vm2136 = vcmp.eq.s32.totalorder %v1048, %v1793
        %vm2137 = vcmp.eq.s32.totalorder %v1049, %v1793
        %vm2138 = vcmp.eq.s32.totalorder %v1048, %v1794
        %vm2139 = vcmp.eq.s32.totalorder %v1049, %v1794
        %vm2140 = vcmp.eq.s32.totalorder %v1048, %v1795
        %vm2141 = vcmp.eq.s32.totalorder %v1049, %v1795
        %vm2142 = vcmp.eq.s32.totalorder %v1048, %v1796
        %vm2143 = vcmp.eq.s32.totalorder %v1049, %v1796
        %vm2144 = vcmp.eq.s32.totalorder %v1048, %v1797
        %vm2145 = vcmp.eq.s32.totalorder %v1049, %v1797
        %vm2146 = vcmp.eq.s32.totalorder %v1048, %v1798
        %vm2147 = vcmp.eq.s32.totalorder %v1049, %v1798
        %vm2148 = vcmp.eq.s32.totalorder %v1048, %v1799
        %vm2149 = vcmp.eq.s32.totalorder %v1049, %v1799
        %vm2150 = vcmp.eq.s32.totalorder %v1048, %v1800
        %vm2151 = vcmp.eq.s32.totalorder %v1049, %v1800
        %vm2152 = vcmp.eq.s32.totalorder %v1048, %v1801
        %vm2153 = vcmp.eq.s32.totalorder %v1049, %v1801
        %v2154 = vsel %vm2122, %v1946, 0.0
        %v2155 = vsel %vm2123, %v1946, 0.0
        %v2156 = vsel %vm2124, %v1947, 0.0
        %v2157 = vsel %vm2125, %v1947, 0.0
        %v2158 = vsel %vm2126, %v1948, 0.0
        %v2159 = vsel %vm2127, %v1948, 0.0
        %v2160 = vsel %vm2128, %v1949, 0.0
        %v2161 = vsel %vm2129, %v1949, 0.0
        %v2162 = vsel %vm2130, %v1950, 0.0
        %v2163 = vsel %vm2131, %v1950, 0.0
        %v2164 = vsel %vm2132, %v1951, 0.0
        %v2165 = vsel %vm2133, %v1951, 0.0
        %v2166 = vsel %vm2134, %v1952, 0.0
        %v2167 = vsel %vm2135, %v1952, 0.0
        %v2168 = vsel %vm2136, %v1953, 0.0
        %v2169 = vsel %vm2137, %v1953, 0.0
        %v2170 = vsel %vm2138, %v1954, 0.0
        %v2171 = vsel %vm2139, %v1954, 0.0
        %v2172 = vsel %vm2140, %v1955, 0.0
        %v2173 = vsel %vm2141, %v1955, 0.0
        %v2174 = vsel %vm2142, %v1956, 0.0
        %v2175 = vsel %vm2143, %v1956, 0.0
        %v2176 = vsel %vm2144, %v1957, 0.0
        %v2177 = vsel %vm2145, %v1957, 0.0
        %v2178 = vsel %vm2146, %v1958, 0.0
        %v2179 = vsel %vm2147, %v1958, 0.0
        %v2180 = vsel %vm2148, %v1959, 0.0
        %v2181 = vsel %vm2149, %v1959, 0.0
        %v2182 = vsel %vm2150, %v1960, 0.0
        %v2183 = vsel %vm2151, %v1960, 0.0
        %v2184 = vsel %vm2152, %v1961, 0.0
        %v2185 = vsel %vm2153, %v1961, 0.0
        %v2186 = vadd.f32 %v2090, %v2154
        %v2187 = vadd.f32 %v2091, %v2155
        %v2188 = vadd.f32 %v2092, %v2156
        %v2189 = vadd.f32 %v2093, %v2157
        %v2190 = vadd.f32 %v2094, %v2158
        %v2191 = vadd.f32 %v2095, %v2159
        %v2192 = vadd.f32 %v2096, %v2160
        %v2193 = vadd.f32 %v2097, %v2161
        %v2194 = vadd.f32 %v2098, %v2162
        %v2195 = vadd.f32 %v2099, %v2163
        %v2196 = vadd.f32 %v2100, %v2164
        %v2197 = vadd.f32 %v2101, %v2165
        %v2198 = vadd.f32 %v2102, %v2166
        %v2199 = vadd.f32 %v2103, %v2167
        %v2200 = vadd.f32 %v2104, %v2168
        %v2201 = vadd.f32 %v2105, %v2169
        %v2202 = vadd.f32 %v2106, %v2170
        %v2203 = vadd.f32 %v2107, %v2171
        %v2204 = vadd.f32 %v2108, %v2172
        %v2205 = vadd.f32 %v2109, %v2173
        %v2206 = vadd.f32 %v2110, %v2174
        %v2207 = vadd.f32 %v2111, %v2175
        %v2208 = vadd.f32 %v2112, %v2176
        %v2209 = vadd.f32 %v2113, %v2177
        %v2210 = vadd.f32 %v2114, %v2178
        %v2211 = vadd.f32 %v2115, %v2179
        %v2212 = vadd.f32 %v2116, %v2180
        %v2213 = vadd.f32 %v2117, %v2181
        %v2214 = vadd.f32 %v2118, %v2182
        %v2215 = vadd.f32 %v2119, %v2183
        %v2216 = vadd.f32 %v2120, %v2184
        %v2217 = vadd.f32 %v2121, %v2185
        %v2218 = vpack.c.bf16 %v2188, %v2186
        %v2219 = vpack.c.bf16 %v2189, %v2187
        %v2220 = vpack.c.bf16 %v2192, %v2190
        %v2221 = vpack.c.bf16 %v2193, %v2191
        %v2222 = vpack.c.bf16 %v2196, %v2194
        %v2223 = vpack.c.bf16 %v2197, %v2195
        %v2224 = vpack.c.bf16 %v2200, %v2198
        %v2225 = vpack.c.bf16 %v2201, %v2199
        %v2226 = vpack.c.bf16 %v2204, %v2202
        %v2227 = vpack.c.bf16 %v2205, %v2203
        %v2228 = vpack.c.bf16 %v2208, %v2206
        %v2229 = vpack.c.bf16 %v2209, %v2207
        %v2230 = vpack.c.bf16 %v2212, %v2210
        %v2231 = vpack.c.bf16 %v2213, %v2211
        %v2232 = vpack.c.bf16 %v2216, %v2214
        %v2233 = vpack.c.bf16 %v2217, %v2215
        %v2234 = vld [vmem:[%s2] sm:$0xf]
        %v2235 = vld [vmem:[%s2 + $0x4] sm:$0xf]
        %v2236 = vld [vmem:[%s2 + $0x8] sm:$0xf]
        %v2237 = vld [vmem:[%s2 + $0xc] sm:$0xf]
        %v2238 = vld [vmem:[%s2 + $0x10] sm:$0xf]
        %v2239 = vld [vmem:[%s2 + $0x14] sm:$0xf]
        %v2240 = vld [vmem:[%s2 + $0x18] sm:$0xf]
        %v2241 = vld [vmem:[%s2 + $0x1c] sm:$0xf]
        %v2242 = vld [vmem:[%s2 + $0x20] sm:$0xf]
        %v2243 = vld [vmem:[%s2 + $0x24] sm:$0xf]
        %v2244 = vld [vmem:[%s2 + $0x28] sm:$0xf]
        %v2245 = vld [vmem:[%s2 + $0x2c] sm:$0xf]
        %v2246 = vld [vmem:[%s2 + $0x30] sm:$0xf]
        %v2247 = vld [vmem:[%s2 + $0x34] sm:$0xf]
        %v2248 = vld [vmem:[%s2 + $0x38] sm:$0xf]
        %v2249 = vld [vmem:[%s2 + $0x3c] sm:$0xf]
        %v2250 = vld [vmem:[%s2 + $0x40] sm:$0xf]
        %v2251 = vld [vmem:[%s2 + $0x44] sm:$0xf]
        %v2252 = vld [vmem:[%s2 + $0x48] sm:$0xf]
        %v2253 = vld [vmem:[%s2 + $0x4c] sm:$0xf]
        %v2254 = vld [vmem:[%s2 + $0x50] sm:$0xf]
        %v2255 = vld [vmem:[%s2 + $0x54] sm:$0xf]
        %v2256 = vld [vmem:[%s2 + $0x58] sm:$0xf]
        %v2257 = vld [vmem:[%s2 + $0x5c] sm:$0xf]
        %v2258 = vld [vmem:[%s2 + $0x60] sm:$0xf]
        %v2259 = vld [vmem:[%s2 + $0x64] sm:$0xf]
        %v2260 = vld [vmem:[%s2 + $0x68] sm:$0xf]
        %v2261 = vld [vmem:[%s2 + $0x6c] sm:$0xf]
        %v2262 = vld [vmem:[%s2 + $0x70] sm:$0xf]
        %v2263 = vld [vmem:[%s2 + $0x74] sm:$0xf]
        %v2264 = vld [vmem:[%s2 + $0x78] sm:$0xf]
        %v2265 = vld [vmem:[%s2 + $0x7c] sm:$0xf]
        %v2266 = vld [vmem:[%s4] sm:$0x1]
        %v2268 = vlaneseq
        %v2269 = vshrl.u32 %v2268, 7
        %v2270 = vsub.s32 0, %v2269
        %v2271 = vrot.slane %v2266, %v2270
        %v2305 = vunpack.c.l.b16 %v2234
        %v2306 = vunpack.c.l.b16 %v2235
        %v2307 = vunpack.c.l.b16 %v2236
        %v2308 = vunpack.c.l.b16 %v2237
        %v2309 = vunpack.c.l.b16 %v2238
        %v2310 = vunpack.c.l.b16 %v2239
        %v2311 = vunpack.c.l.b16 %v2240
        %v2312 = vunpack.c.l.b16 %v2241
        %v2313 = vunpack.c.l.b16 %v2242
        %v2314 = vunpack.c.l.b16 %v2243
        %v2315 = vunpack.c.l.b16 %v2244
        %v2316 = vunpack.c.l.b16 %v2245
        %v2317 = vunpack.c.l.b16 %v2246
        %v2318 = vunpack.c.l.b16 %v2247
        %v2319 = vunpack.c.l.b16 %v2248
        %v2320 = vunpack.c.l.b16 %v2249
        %v2321 = vunpack.c.l.b16 %v2250
        %v2322 = vunpack.c.l.b16 %v2251
        %v2323 = vunpack.c.l.b16 %v2252
        %v2324 = vunpack.c.l.b16 %v2253
        %v2325 = vunpack.c.l.b16 %v2254
        %v2326 = vunpack.c.l.b16 %v2255
        %v2327 = vunpack.c.l.b16 %v2256
        %v2328 = vunpack.c.l.b16 %v2257
        %v2329 = vunpack.c.l.b16 %v2258
        %v2330 = vunpack.c.l.b16 %v2259
        %v2331 = vunpack.c.l.b16 %v2260
        %v2332 = vunpack.c.l.b16 %v2261
        %v2333 = vunpack.c.l.b16 %v2262
        %v2334 = vunpack.c.l.b16 %v2263
        %v2335 = vunpack.c.l.b16 %v2264
        %v2336 = vunpack.c.l.b16 %v2265
        %v2337 = vpack.c.b16 %v2306, %v2305
        %v2338 = vpack.c.b16 %v2308, %v2307
        %v2339 = vpack.c.b16 %v2310, %v2309
        %v2340 = vpack.c.b16 %v2312, %v2311
        %v2341 = vpack.c.b16 %v2314, %v2313
        %v2342 = vpack.c.b16 %v2316, %v2315
        %v2343 = vpack.c.b16 %v2318, %v2317
        %v2344 = vpack.c.b16 %v2320, %v2319
        %v2345 = vpack.c.b16 %v2322, %v2321
        %v2346 = vpack.c.b16 %v2324, %v2323
        %v2347 = vpack.c.b16 %v2326, %v2325
        %v2348 = vpack.c.b16 %v2328, %v2327
        %v2349 = vpack.c.b16 %v2330, %v2329
        %v2350 = vpack.c.b16 %v2332, %v2331
        %v2351 = vpack.c.b16 %v2334, %v2333
        %v2352 = vpack.c.b16 %v2336, %v2335
        %2369 = vmatprep.subr.bf16.mxu0 0
        %2370 = vmatpush1.bf16.msra.mxu0 %v2337
        %2371 = vmatprep.subr.bf16.mxu0 0
        %2372 = vmatpush1.bf16.msra.mxu0 %v2338
        %2373 = vmatprep.subr.bf16.mxu0 0
        %2374 = vmatpush1.bf16.msra.mxu0 %v2339
        %2375 = vmatprep.subr.bf16.mxu0 0
        %2376 = vmatpush1.bf16.msra.mxu0 %v2340
        %2377 = vmatprep.subr.bf16.mxu0 0
        %2378 = vmatpush1.bf16.msra.mxu0 %v2341
        %2379 = vmatprep.subr.bf16.mxu0 0
        %2380 = vmatpush1.bf16.msra.mxu0 %v2342
        %2381 = vmatprep.subr.bf16.mxu0 0
        %2382 = vmatpush1.bf16.msra.mxu0 %v2343
        %2383 = vmatprep.subr.bf16.mxu0 0
        %2384 = vmatpush1.bf16.msra.mxu0 %v2344
        %2385 = vmatprep.subr.bf16.mxu0 0
        %2386 = vmatpush1.bf16.msra.mxu0 %v2345
        %2387 = vmatprep.subr.bf16.mxu0 0
        %2388 = vmatpush1.bf16.msra.mxu0 %v2346
        %2389 = vmatprep.subr.bf16.mxu0 0
        %2390 = vmatpush1.bf16.msra.mxu0 %v2347
        %2391 = vmatprep.subr.bf16.mxu0 0
        %2392 = vmatpush1.bf16.msra.mxu0 %v2348
        %2393 = vmatprep.subr.bf16.mxu0 0
        %2394 = vmatpush1.bf16.msra.mxu0 %v2349
        %2395 = vmatprep.subr.bf16.mxu0 0
        %2396 = vmatpush1.bf16.msra.mxu0 %v2350
        %2397 = vmatprep.subr.bf16.mxu0 0
        %2398 = vmatpush1.bf16.msra.mxu0 %v2351
        %2399 = vmatprep.subr.bf16.mxu0 0
        %2400 = vmatpush1.bf16.msra.mxu0 %v2352
        %2401 = vmatprep.mubr.bf16.mxu0 %v2219
        %2402 = vmatmul.mubr.bf16.gmra.mrb[0].mxu0 %v2218
        %v2403 = vpop.f32.mrb[0].mxu0
        %v2404 = vadd.f32 %v2271, %v2403
        %v2405 = vpop.f32.mrb[0].mxu0
        %v2406 = vpop.f32.mrb[0].mxu0
        %v2407 = vadd.f32 %v2271, %v2406
        %v2408 = vpop.f32.mrb[0].mxu0
        %2409 = vmatprep.mubr.bf16.mxu0 %v2221
        %2410 = vmatmul.mubr.bf16.gmra.mrb[0].mxu0 %v2220
        %v2411 = vpop.f32.mrb[0].mxu0
        %v2412 = vadd.f32 %v2271, %v2411
        %v2413 = vpop.f32.mrb[0].mxu0
        %v2414 = vpop.f32.mrb[0].mxu0
        %v2415 = vadd.f32 %v2271, %v2414
        %v2416 = vpop.f32.mrb[0].mxu0
        %2417 = vmatprep.mubr.bf16.mxu0 %v2223
        %2418 = vmatmul.mubr.bf16.gmra.mrb[0].mxu0 %v2222
        %v2419 = vpop.f32.mrb[0].mxu0
        %v2420 = vadd.f32 %v2271, %v2419
        %v2421 = vpop.f32.mrb[0].mxu0
        %v2422 = vpop.f32.mrb[0].mxu0
        %v2423 = vadd.f32 %v2271, %v2422
        %v2424 = vpop.f32.mrb[0].mxu0
        %2425 = vmatprep.mubr.bf16.mxu0 %v2225
        %2426 = vmatmul.mubr.bf16.gmra.mrb[0].mxu0 %v2224
        %v2427 = vpop.f32.mrb[0].mxu0
        %v2428 = vadd.f32 %v2271, %v2427
        %v2429 = vpop.f32.mrb[0].mxu0
        %v2430 = vpop.f32.mrb[0].mxu0
        %v2431 = vadd.f32 %v2271, %v2430
        %v2432 = vpop.f32.mrb[0].mxu0
        %2433 = vmatprep.mubr.bf16.mxu0 %v2227
        %2434 = vmatmul.mubr.bf16.gmra.mrb[0].mxu0 %v2226
        %v2435 = vpop.f32.mrb[0].mxu0
        %v2436 = vadd.f32 %v2271, %v2435
        %v2437 = vpop.f32.mrb[0].mxu0
        %v2438 = vpop.f32.mrb[0].mxu0
        %v2439 = vadd.f32 %v2271, %v2438
        %v2440 = vpop.f32.mrb[0].mxu0
        %2441 = vmatprep.mubr.bf16.mxu0 %v2229
        %2442 = vmatmul.mubr.bf16.gmra.mrb[0].mxu0 %v2228
        %v2443 = vpop.f32.mrb[0].mxu0
        %v2444 = vadd.f32 %v2271, %v2443
        %v2445 = vpop.f32.mrb[0].mxu0
        %v2446 = vpop.f32.mrb[0].mxu0
        %v2447 = vadd.f32 %v2271, %v2446
        %v2448 = vpop.f32.mrb[0].mxu0
        %2449 = vmatprep.mubr.bf16.mxu0 %v2231
        %2450 = vmatmul.mubr.bf16.gmra.mrb[0].mxu0 %v2230
        %v2451 = vpop.f32.mrb[0].mxu0
        %v2452 = vadd.f32 %v2271, %v2451
        %v2453 = vpop.f32.mrb[0].mxu0
        %v2454 = vpop.f32.mrb[0].mxu0
        %v2455 = vadd.f32 %v2271, %v2454
        %v2456 = vpop.f32.mrb[0].mxu0
        %2457 = vmatprep.mubr.bf16.mxu0 %v2233
        %2458 = vmatmul.mubr.bf16.gmra.mrb[0].mxu0 %v2232
        %v2459 = vpop.f32.mrb[0].mxu0
        %v2460 = vadd.f32 %v2271, %v2459
        %v2461 = vpop.f32.mrb[0].mxu0
        %v2462 = vpop.f32.mrb[0].mxu0
        %v2463 = vadd.f32 %v2271, %v2462
        %v2464 = vpop.f32.mrb[0].mxu0
        %2465 = vdwg.mxu0
        %v2466 = vmax.f32 %v2404, 0.0
        %v2467 = vmax.f32 %v2407, 0.0
        %v2468 = vmax.f32 %v2412, 0.0
        %v2469 = vmax.f32 %v2415, 0.0
        %v2470 = vmax.f32 %v2420, 0.0
        %v2471 = vmax.f32 %v2423, 0.0
        %v2472 = vmax.f32 %v2428, 0.0
        %v2473 = vmax.f32 %v2431, 0.0
        %v2474 = vmax.f32 %v2436, 0.0
        %v2475 = vmax.f32 %v2439, 0.0
        %v2476 = vmax.f32 %v2444, 0.0
        %v2477 = vmax.f32 %v2447, 0.0
        %v2478 = vmax.f32 %v2452, 0.0
        %v2479 = vmax.f32 %v2455, 0.0
        %v2480 = vmax.f32 %v2460, 0.0
        %v2481 = vmax.f32 %v2463, 0.0
        %v2482 = vpack.c.bf16 %v2467, %v2466
        %v2483 = vpack.c.bf16 %v2469, %v2468
        %v2484 = vpack.c.bf16 %v2471, %v2470
        %v2485 = vpack.c.bf16 %v2473, %v2472
        %v2486 = vpack.c.bf16 %v2475, %v2474
        %v2487 = vpack.c.bf16 %v2477, %v2476
        %v2488 = vpack.c.bf16 %v2479, %v2478
        %v2489 = vpack.c.bf16 %v2481, %v2480
        %v2490 = vld [vmem:[%s5] sm:$0xf]
        %v2491 = vld [vmem:[%s5 + $0x4] sm:$0xf]
        %v2492 = vld [vmem:[%s5 + $0x8] sm:$0xf]
        %v2493 = vld [vmem:[%s5 + $0xc] sm:$0xf]
        %v2494 = vld [vmem:[%s5 + $0x10] sm:$0xf]
        %v2495 = vld [vmem:[%s5 + $0x14] sm:$0xf]
        %v2496 = vld [vmem:[%s5 + $0x18] sm:$0xf]
        %v2497 = vld [vmem:[%s5 + $0x1c] sm:$0xf]
        %v2498 = vld [vmem:[%s5 + $0x20] sm:$0xf]
        %v2499 = vld [vmem:[%s5 + $0x24] sm:$0xf]
        %v2500 = vld [vmem:[%s5 + $0x28] sm:$0xf]
        %v2501 = vld [vmem:[%s5 + $0x2c] sm:$0xf]
        %v2502 = vld [vmem:[%s5 + $0x30] sm:$0xf]
        %v2503 = vld [vmem:[%s5 + $0x34] sm:$0xf]
        %v2504 = vld [vmem:[%s5 + $0x38] sm:$0xf]
        %v2505 = vld [vmem:[%s5 + $0x3c] sm:$0xf]
        %v2506 = vld [vmem:[%s326] sm:$0xf]
        %v2507 = vld [vmem:[%s326 + $0x4] sm:$0xf]
        %v2508 = vld [vmem:[%s326 + $0x8] sm:$0xf]
        %v2509 = vld [vmem:[%s326 + $0xc] sm:$0xf]
        %v2510 = vld [vmem:[%s326 + $0x10] sm:$0xf]
        %v2511 = vld [vmem:[%s326 + $0x14] sm:$0xf]
        %v2512 = vld [vmem:[%s326 + $0x18] sm:$0xf]
        %v2513 = vld [vmem:[%s326 + $0x1c] sm:$0xf]
        %v2514 = vld [vmem:[%s326 + $0x20] sm:$0xf]
        %v2515 = vld [vmem:[%s326 + $0x24] sm:$0xf]
        %v2516 = vld [vmem:[%s326 + $0x28] sm:$0xf]
        %v2517 = vld [vmem:[%s326 + $0x2c] sm:$0xf]
        %v2518 = vld [vmem:[%s326 + $0x30] sm:$0xf]
        %v2519 = vld [vmem:[%s326 + $0x34] sm:$0xf]
        %v2520 = vld [vmem:[%s326 + $0x38] sm:$0xf]
        %v2521 = vld [vmem:[%s326 + $0x3c] sm:$0xf]
        %v2522 = vld [vmem:[%s6] sm:$0xf]
        %v2539 = vunpack.c.l.b16 %v2506
        %v2540 = vunpack.c.l.b16 %v2507
        %v2541 = vunpack.c.l.b16 %v2508
        %v2542 = vunpack.c.l.b16 %v2509
        %v2543 = vunpack.c.l.b16 %v2510
        %v2544 = vunpack.c.l.b16 %v2511
        %v2545 = vunpack.c.l.b16 %v2512
        %v2546 = vunpack.c.l.b16 %v2513
        %v2547 = vunpack.c.l.b16 %v2514
        %v2548 = vunpack.c.l.b16 %v2515
        %v2549 = vunpack.c.l.b16 %v2516
        %v2550 = vunpack.c.l.b16 %v2517
        %v2551 = vunpack.c.l.b16 %v2518
        %v2552 = vunpack.c.l.b16 %v2519
        %v2553 = vunpack.c.l.b16 %v2520
        %v2554 = vunpack.c.l.b16 %v2521
        %v2555 = vpack.c.b16 %v2540, %v2539
        %v2556 = vpack.c.b16 %v2542, %v2541
        %v2557 = vpack.c.b16 %v2544, %v2543
        %v2558 = vpack.c.b16 %v2546, %v2545
        %v2559 = vpack.c.b16 %v2548, %v2547
        %v2560 = vpack.c.b16 %v2550, %v2549
        %v2561 = vpack.c.b16 %v2552, %v2551
        %v2562 = vpack.c.b16 %v2554, %v2553
        %vm2563 = vcmask 64512
        %v2565 = vsel %vm2563, %v2555, 0
        %v2568 = vsel %vm2563, %v2556, 0
        %v2571 = vsel %vm2563, %v2557, 0
        %v2574 = vsel %vm2563, %v2558, 0
        %v2577 = vsel %vm2563, %v2559, 0
        %v2580 = vsel %vm2563, %v2560, 0
        %v2583 = vsel %vm2563, %v2561, 0
        %v2586 = vsel %vm2563, %v2562, 0
        %vm2588 = vcmask 1043456
        %v2590 = vsel %vm2588, %v2522, 0
        %2592 = vmatprep.subr.bf16.mxu0 0
        %2593 = vmatpush1.bf16.msra.mxu0 %v2590
        %2594 = vmatprep.subr.bf16.mxu0 0
        %2595 = vmatpush1.bf16.msra.mxu0 0
        %2596 = vmatprep.subr.bf16.mxu0 0
        %2597 = vmatpush1.bf16.msra.mxu0 0
        %2598 = vmatprep.subr.bf16.mxu0 0
        %2599 = vmatpush1.bf16.msra.mxu0 0
        %2600 = vmatprep.subr.bf16.mxu0 0
        %2601 = vmatpush1.bf16.msra.mxu0 0
        %2602 = vmatprep.subr.bf16.mxu0 0
        %2603 = vmatpush1.bf16.msra.mxu0 0
        %2604 = vmatprep.subr.bf16.mxu0 0
        %2605 = vmatpush1.bf16.msra.mxu0 0
        %2606 = vmatprep.subr.bf16.mxu0 0
        %2607 = vmatpush1.bf16.msra.mxu0 0
        %2608 = vmatprep.subr.bf16.mxu0 0
        %2609 = vmatpush1.bf16.msra.mxu0 0
        %2610 = vmatprep.subr.bf16.mxu0 0
        %2611 = vmatpush1.bf16.msra.mxu0 0
        %2612 = vmatprep.subr.bf16.mxu0 0
        %2613 = vmatpush1.bf16.msra.mxu0 0
        %2614 = vmatprep.subr.bf16.mxu0 0
        %2615 = vmatpush1.bf16.msra.mxu0 0
        %2616 = vmatprep.subr.bf16.mxu0 0
        %2617 = vmatpush1.bf16.msra.mxu0 0
        %2618 = vmatprep.subr.bf16.mxu0 0
        %2619 = vmatpush1.bf16.msra.mxu0 0
        %2620 = vmatprep.subr.bf16.mxu0 0
        %2621 = vmatpush1.bf16.msra.mxu0 0
        %2622 = vmatprep.subr.bf16.mxu0 0
        %2623 = vmatpush1.bf16.msra.mxu0 0
        %2624 = vmatprep.mubr.bf16.mxu0 0
        %2625 = vmatmul.mubr.bf16.gmra.mrb[0].mxu0 %v2565
        %v2626 = vpop.f32.mrb[0].mxu0
        %v2627 = vadd.f32 0.0, %v2626
        %v2628 = vpop.f32.mrb[0].mxu0
        %v2629 = vpop.f32.mrb[0].mxu0
        %v2630 = vadd.f32 0.0, %v2629
        %v2631 = vpop.f32.mrb[0].mxu0
        %2632 = vmatprep.mubr.bf16.mxu0 0
        %2633 = vmatmul.mubr.bf16.gmra.mrb[0].mxu0 %v2568
        %v2634 = vpop.f32.mrb[0].mxu0
        %v2635 = vadd.f32 0.0, %v2634
        %v2636 = vpop.f32.mrb[0].mxu0
        %v2637 = vpop.f32.mrb[0].mxu0
        %v2638 = vadd.f32 0.0, %v2637
        %v2639 = vpop.f32.mrb[0].mxu0
        %2640 = vmatprep.mubr.bf16.mxu0 0
        %2641 = vmatmul.mubr.bf16.gmra.mrb[0].mxu0 %v2571
        %v2642 = vpop.f32.mrb[0].mxu0
        %v2643 = vadd.f32 0.0, %v2642
        %v2644 = vpop.f32.mrb[0].mxu0
        %v2645 = vpop.f32.mrb[0].mxu0
        %v2646 = vadd.f32 0.0, %v2645
        %v2647 = vpop.f32.mrb[0].mxu0
        %2648 = vmatprep.mubr.bf16.mxu0 0
        %2649 = vmatmul.mubr.bf16.gmra.mrb[0].mxu0 %v2574
        %v2650 = vpop.f32.mrb[0].mxu0
        %v2651 = vadd.f32 0.0, %v2650
        %v2652 = vpop.f32.mrb[0].mxu0
        %v2653 = vpop.f32.mrb[0].mxu0
        %v2654 = vadd.f32 0.0, %v2653
        %v2655 = vpop.f32.mrb[0].mxu0
        %2656 = vmatprep.mubr.bf16.mxu0 0
        %2657 = vmatmul.mubr.bf16.gmra.mrb[0].mxu0 %v2577
        %v2658 = vpop.f32.mrb[0].mxu0
        %v2659 = vadd.f32 0.0, %v2658
        %v2660 = vpop.f32.mrb[0].mxu0
        %v2661 = vpop.f32.mrb[0].mxu0
        %v2662 = vadd.f32 0.0, %v2661
        %v2663 = vpop.f32.mrb[0].mxu0
        %2664 = vmatprep.mubr.bf16.mxu0 0
        %2665 = vmatmul.mubr.bf16.gmra.mrb[0].mxu0 %v2580
        %v2666 = vpop.f32.mrb[0].mxu0
        %v2667 = vadd.f32 0.0, %v2666
        %v2668 = vpop.f32.mrb[0].mxu0
        %v2669 = vpop.f32.mrb[0].mxu0
        %v2670 = vadd.f32 0.0, %v2669
        %v2671 = vpop.f32.mrb[0].mxu0
        %2672 = vmatprep.mubr.bf16.mxu0 0
        %2673 = vmatmul.mubr.bf16.gmra.mrb[0].mxu0 %v2583
        %v2674 = vpop.f32.mrb[0].mxu0
        %v2675 = vadd.f32 0.0, %v2674
        %v2676 = vpop.f32.mrb[0].mxu0
        %v2677 = vpop.f32.mrb[0].mxu0
        %v2678 = vadd.f32 0.0, %v2677
        %v2679 = vpop.f32.mrb[0].mxu0
        %2680 = vmatprep.mubr.bf16.mxu0 0
        %2681 = vmatmul.mubr.bf16.gmra.mrb[0].mxu0 %v2586
        %v2682 = vpop.f32.mrb[0].mxu0
        %v2683 = vadd.f32 0.0, %v2682
        %v2684 = vpop.f32.mrb[0].mxu0
        %v2685 = vpop.f32.mrb[0].mxu0
        %v2686 = vadd.f32 0.0, %v2685
        %v2687 = vpop.f32.mrb[0].mxu0
        %2688 = vdwg.mxu0
        %v2705 = vunpack.c.l.b16 %v2490
        %v2706 = vunpack.c.l.b16 %v2491
        %v2707 = vunpack.c.l.b16 %v2492
        %v2708 = vunpack.c.l.b16 %v2493
        %v2709 = vunpack.c.l.b16 %v2494
        %v2710 = vunpack.c.l.b16 %v2495
        %v2711 = vunpack.c.l.b16 %v2496
        %v2712 = vunpack.c.l.b16 %v2497
        %v2713 = vunpack.c.l.b16 %v2498
        %v2714 = vunpack.c.l.b16 %v2499
        %v2715 = vunpack.c.l.b16 %v2500
        %v2716 = vunpack.c.l.b16 %v2501
        %v2717 = vunpack.c.l.b16 %v2502
        %v2718 = vunpack.c.l.b16 %v2503
        %v2719 = vunpack.c.l.b16 %v2504
        %v2720 = vunpack.c.l.b16 %v2505
        %v2721 = vpack.c.b16 %v2706, %v2705
        %v2722 = vpack.c.b16 %v2708, %v2707
        %v2723 = vpack.c.b16 %v2710, %v2709
        %v2724 = vpack.c.b16 %v2712, %v2711
        %v2725 = vpack.c.b16 %v2714, %v2713
        %v2726 = vpack.c.b16 %v2716, %v2715
        %v2727 = vpack.c.b16 %v2718, %v2717
        %v2728 = vpack.c.b16 %v2720, %v2719
        %2737 = vmatprep.subr.bf16.mxu0 0
        %2738 = vmatpush1.bf16.msra.mxu0 %v2721
        %2739 = vmatprep.subr.bf16.mxu0 0
        %2740 = vmatpush1.bf16.msra.mxu0 %v2722
        %2741 = vmatprep.subr.bf16.mxu0 0
        %2742 = vmatpush1.bf16.msra.mxu0 %v2723
        %2743 = vmatprep.subr.bf16.mxu0 0
        %2744 = vmatpush1.bf16.msra.mxu0 %v2724
        %2745 = vmatprep.subr.bf16.mxu0 0
        %2746 = vmatpush1.bf16.msra.mxu0 %v2725
        %2747 = vmatprep.subr.bf16.mxu0 0
        %2748 = vmatpush1.bf16.msra.mxu0 %v2726
        %2749 = vmatprep.subr.bf16.mxu0 0
        %2750 = vmatpush1.bf16.msra.mxu0 %v2727
        %2751 = vmatprep.subr.bf16.mxu0 0
        %2752 = vmatpush1.bf16.msra.mxu0 %v2728
        %2753 = vmatprep.subr.bf16.mxu0 0
        %2754 = vmatpush1.bf16.msra.mxu0 0
        %2755 = vmatprep.subr.bf16.mxu0 0
        %2756 = vmatpush1.bf16.msra.mxu0 0
        %2757 = vmatprep.subr.bf16.mxu0 0
        %2758 = vmatpush1.bf16.msra.mxu0 0
        %2759 = vmatprep.subr.bf16.mxu0 0
        %2760 = vmatpush1.bf16.msra.mxu0 0
        %2761 = vmatprep.subr.bf16.mxu0 0
        %2762 = vmatpush1.bf16.msra.mxu0 0
        %2763 = vmatprep.subr.bf16.mxu0 0
        %2764 = vmatpush1.bf16.msra.mxu0 0
        %2765 = vmatprep.subr.bf16.mxu0 0
        %2766 = vmatpush1.bf16.msra.mxu0 0
        %2767 = vmatprep.subr.bf16.mxu0 0
        %2768 = vmatpush1.bf16.msra.mxu0 0
        %2769 = vmatprep.mubr.bf16.mxu0 0
        %2770 = vmatmul.mubr.bf16.gmra.mrb[0].mxu0 %v2482
        %v2771 = vpop.f32.mrb[0].mxu0
        %v2772 = vadd.f32 %v2627, %v2771
        %v2773 = vpop.f32.mrb[0].mxu0
        %v2774 = vpop.f32.mrb[0].mxu0
        %v2775 = vadd.f32 %v2630, %v2774
        %v2776 = vpop.f32.mrb[0].mxu0
        %2777 = vmatprep.mubr.bf16.mxu0 0
        %2778 = vmatmul.mubr.bf16.gmra.mrb[0].mxu0 %v2483
        %v2779 = vpop.f32.mrb[0].mxu0
        %v2780 = vadd.f32 %v2635, %v2779
        %v2781 = vpop.f32.mrb[0].mxu0
        %v2782 = vpop.f32.mrb[0].mxu0
        %v2783 = vadd.f32 %v2638, %v2782
        %v2784 = vpop.f32.mrb[0].mxu0
        %2785 = vmatprep.mubr.bf16.mxu0 0
        %2786 = vmatmul.mubr.bf16.gmra.mrb[0].mxu0 %v2484
        %v2787 = vpop.f32.mrb[0].mxu0
        %v2788 = vadd.f32 %v2643, %v2787
        %v2789 = vpop.f32.mrb[0].mxu0
        %v2790 = vpop.f32.mrb[0].mxu0
        %v2791 = vadd.f32 %v2646, %v2790
        %v2792 = vpop.f32.mrb[0].mxu0
        %2793 = vmatprep.mubr.bf16.mxu0 0
        %2794 = vmatmul.mubr.bf16.gmra.mrb[0].mxu0 %v2485
        %v2795 = vpop.f32.mrb[0].mxu0
        %v2796 = vadd.f32 %v2651, %v2795
        %v2797 = vpop.f32.mrb[0].mxu0
        %v2798 = vpop.f32.mrb[0].mxu0
        %v2799 = vadd.f32 %v2654, %v2798
        %v2800 = vpop.f32.mrb[0].mxu0
        %2801 = vmatprep.mubr.bf16.mxu0 0
        %2802 = vmatmul.mubr.bf16.gmra.mrb[0].mxu0 %v2486
        %v2803 = vpop.f32.mrb[0].mxu0
        %v2804 = vadd.f32 %v2659, %v2803
        %v2805 = vpop.f32.mrb[0].mxu0
        %v2806 = vpop.f32.mrb[0].mxu0
        %v2807 = vadd.f32 %v2662, %v2806
        %v2808 = vpop.f32.mrb[0].mxu0
        %2809 = vmatprep.mubr.bf16.mxu0 0
        %2810 = vmatmul.mubr.bf16.gmra.mrb[0].mxu0 %v2487
        %v2811 = vpop.f32.mrb[0].mxu0
        %v2812 = vadd.f32 %v2667, %v2811
        %v2813 = vpop.f32.mrb[0].mxu0
        %v2814 = vpop.f32.mrb[0].mxu0
        %v2815 = vadd.f32 %v2670, %v2814
        %v2816 = vpop.f32.mrb[0].mxu0
        %2817 = vmatprep.mubr.bf16.mxu0 0
        %2818 = vmatmul.mubr.bf16.gmra.mrb[0].mxu0 %v2488
        %v2819 = vpop.f32.mrb[0].mxu0
        %v2820 = vadd.f32 %v2675, %v2819
        %v2821 = vpop.f32.mrb[0].mxu0
        %v2822 = vpop.f32.mrb[0].mxu0
        %v2823 = vadd.f32 %v2678, %v2822
        %v2824 = vpop.f32.mrb[0].mxu0
        %2825 = vmatprep.mubr.bf16.mxu0 0
        %2826 = vmatmul.mubr.bf16.gmra.mrb[0].mxu0 %v2489
        %v2827 = vpop.f32.mrb[0].mxu0
        %v2828 = vadd.f32 %v2683, %v2827
        %v2829 = vpop.f32.mrb[0].mxu0
        %v2830 = vpop.f32.mrb[0].mxu0
        %v2831 = vadd.f32 %v2686, %v2830
        %v2832 = vpop.f32.mrb[0].mxu0
        %2833 = vdwg.mxu0
        %v2834 = vld [vmem:[%s7] sm:$0x1]
        %v2836 = vlaneseq
        %v2837 = vshrl.u32 %v2836, 7
        %v2838 = vsub.s32 0, %v2837
        %v2839 = vrot.slane %v2834, %v2838
        %v2841 = vadd.f32 %v2772, %v2839
        %v2842 = vadd.f32 %v2775, %v2839
        %v2843 = vadd.f32 %v2780, %v2839
        %v2844 = vadd.f32 %v2783, %v2839
        %v2845 = vadd.f32 %v2788, %v2839
        %v2846 = vadd.f32 %v2791, %v2839
        %v2847 = vadd.f32 %v2796, %v2839
        %v2848 = vadd.f32 %v2799, %v2839
        %v2849 = vadd.f32 %v2804, %v2839
        %v2850 = vadd.f32 %v2807, %v2839
        %v2851 = vadd.f32 %v2812, %v2839
        %v2852 = vadd.f32 %v2815, %v2839
        %v2853 = vadd.f32 %v2820, %v2839
        %v2854 = vadd.f32 %v2823, %v2839
        %v2855 = vadd.f32 %v2828, %v2839
        %v2856 = vadd.f32 %v2831, %v2839
        %v2857 = vmax.f32 %v2841, 0.0
        %v2858 = vmax.f32 %v2842, 0.0
        %v2859 = vmax.f32 %v2843, 0.0
        %v2860 = vmax.f32 %v2844, 0.0
        %v2861 = vmax.f32 %v2845, 0.0
        %v2862 = vmax.f32 %v2846, 0.0
        %v2863 = vmax.f32 %v2847, 0.0
        %v2864 = vmax.f32 %v2848, 0.0
        %v2865 = vmax.f32 %v2849, 0.0
        %v2866 = vmax.f32 %v2850, 0.0
        %v2867 = vmax.f32 %v2851, 0.0
        %v2868 = vmax.f32 %v2852, 0.0
        %v2869 = vmax.f32 %v2853, 0.0
        %v2870 = vmax.f32 %v2854, 0.0
        %v2871 = vmax.f32 %v2855, 0.0
        %v2872 = vmax.f32 %v2856, 0.0
        %v2873 = vpack.c.bf16 %v2858, %v2857
        %v2874 = vpack.c.bf16 %v2860, %v2859
        %v2875 = vpack.c.bf16 %v2862, %v2861
        %v2876 = vpack.c.bf16 %v2864, %v2863
        %v2877 = vpack.c.bf16 %v2866, %v2865
        %v2878 = vpack.c.bf16 %v2868, %v2867
        %v2879 = vpack.c.bf16 %v2870, %v2869
        %v2880 = vpack.c.bf16 %v2872, %v2871
        %v2889 = vunpack.c.l.b16 %v2873
        %v2890 = vunpack.c.h.b16 %v2873
        %v2891 = vunpack.c.l.b16 %v2874
        %v2892 = vunpack.c.h.b16 %v2874
        %v2893 = vunpack.c.l.b16 %v2875
        %v2894 = vunpack.c.h.b16 %v2875
        %v2895 = vunpack.c.l.b16 %v2876
        %v2896 = vunpack.c.h.b16 %v2876
        %v2897 = vunpack.c.l.b16 %v2877
        %v2898 = vunpack.c.h.b16 %v2877
        %v2899 = vunpack.c.l.b16 %v2878
        %v2900 = vunpack.c.h.b16 %v2878
        %v2901 = vunpack.c.l.b16 %v2879
        %v2902 = vunpack.c.h.b16 %v2879
        %v2903 = vunpack.c.l.b16 %v2880
        %v2904 = vunpack.c.h.b16 %v2880
        %v2905 = vpack.c.b16 %v2889, %v2889
        %v2906 = vpack.c.b16 %v2890, %v2890
        %v2907 = vpack.c.b16 %v2891, %v2891
        %v2908 = vpack.c.b16 %v2892, %v2892
        %v2909 = vpack.c.b16 %v2893, %v2893
        %v2910 = vpack.c.b16 %v2894, %v2894
        %v2911 = vpack.c.b16 %v2895, %v2895
        %v2912 = vpack.c.b16 %v2896, %v2896
        %v2913 = vpack.c.b16 %v2897, %v2897
        %v2914 = vpack.c.b16 %v2898, %v2898
        %v2915 = vpack.c.b16 %v2899, %v2899
        %v2916 = vpack.c.b16 %v2900, %v2900
        %v2917 = vpack.c.b16 %v2901, %v2901
        %v2918 = vpack.c.b16 %v2902, %v2902
        %v2919 = vpack.c.b16 %v2903, %v2903
        %v2920 = vpack.c.b16 %v2904, %v2904
        %2937 = vst [vmem:[%s315] sm:$0xf] %v2905
        %2938 = vst [vmem:[%s315 + $0x4] sm:$0xf] %v2906
        %2939 = vst [vmem:[%s315 + $0x8] sm:$0xf] %v2907
        %2940 = vst [vmem:[%s315 + $0xc] sm:$0xf] %v2908
        %2941 = vst [vmem:[%s315 + $0x10] sm:$0xf] %v2909
        %2942 = vst [vmem:[%s315 + $0x14] sm:$0xf] %v2910
        %2943 = vst [vmem:[%s315 + $0x18] sm:$0xf] %v2911
        %2944 = vst [vmem:[%s315 + $0x1c] sm:$0xf] %v2912
        %2945 = vst [vmem:[%s315 + $0x20] sm:$0xf] %v2913
        %2946 = vst [vmem:[%s315 + $0x24] sm:$0xf] %v2914
        %2947 = vst [vmem:[%s315 + $0x28] sm:$0xf] %v2915
        %2948 = vst [vmem:[%s315 + $0x2c] sm:$0xf] %v2916
        %2949 = vst [vmem:[%s315 + $0x30] sm:$0xf] %v2917
        %2950 = vst [vmem:[%s315 + $0x34] sm:$0xf] %v2918
        %2951 = vst [vmem:[%s315 + $0x38] sm:$0xf] %v2919
        %2952 = vst [vmem:[%s315 + $0x3c] sm:$0xf] %v2920
        %s2953 = sand.u32 %s208, 1
        %s2954 = scalar_lea.sflag [#allocation3], %s2953
        %s2955 = sand.u32 %s208, 1
        %s2956 = smul.addr %s2955, 64
        %s2957 = scalar_lea.vmem [#allocation2], %s2956
        // Predicated region
        $region53: #{tpu_custom_call.1} parent=51 // pred_check
          %p2958 = pneg %p218
        $region54: #{tpu_custom_call.1} parent=51 // pred_check_branch
          %2960 = sbr.rel (%p2958) target = $region56
        $region55: #{tpu_custom_call.1} parent=51 // pred_region
          %s2961 = smul.u32 16, %s22
          %s2963 = ssub.s32 1024, 1024
          %2964 = vsyncadd %s2954, %s2963
          %s2965 = smul.addr %s2961, 64
          %s2966 = scalar_lea.hbm %s8, %s2965
          %s2967 = sshll.u32 %s2957, 4
          %s2968 = int_to_ptr.vmem [resolvable:$true] %s2967
          %2973 = dma.vmem_to_hbm [thread:$0]  %s2968, 1024, %s2966, %s2954, 64, 64, 4
        $region56: #{tpu_custom_call.1} parent=51 // pred_fallthru
          _
      $region52: #{tpu_custom_call.1} parent=5 // pred_fallthru
        _
      %p2974 = scmp.le.s32.totalorder 2, %s17
      // Predicated region
      $region57: #{tpu_custom_call.1} parent=5 // pred_check
        %p2975 = pneg %p2974
      $region58: #{tpu_custom_call.1} parent=5 // pred_check_branch
        %2977 = sbr.rel (%p2975) target = $region60
      $region59: #{tpu_custom_call.1} parent=5 // pred_region
        %s2978 = ssub.s32 %s17, 2
        // Predicated region
        $region61: #{tpu_custom_call.1} parent=59 // pred_check
          %p2979 = pneg %p224
        $region62: #{tpu_custom_call.1} parent=59 // pred_check_branch
          %2981 = sbr.rel (%p2979) target = $region64
        $region63: #{tpu_custom_call.1} parent=59 // pred_region
          %s2982 = sand.u32 %s209, 1
          %s2983 = scalar_lea.sflag [#allocation3], %s2982
          %s2984 = sand.u32 %s209, 1
          %s2985 = smul.addr %s2984, 64
          %s2986 = scalar_lea.vmem [#allocation2], %s2985
          %2987 = dma.done %s2983, 1024
        $region64: #{tpu_custom_call.1} parent=59 // pred_fallthru
          _
      $region60: #{tpu_custom_call.1} parent=5 // pred_fallthru
        _
    $region6: #{tpu_custom_call.1} parent=1 // loop_footer
      %s21 = sadd.s32 1, %s17
    $region7: #{tpu_custom_call.1} parent=1 // loop_footer_branch
      %16 = sbr.rel target = $region3
    $region8: #{tpu_custom_call.1} parent=1 // loop_exit
      _
    %2988 = vsyncpa [#allocation3], 1
    %s2989 = scalar_lea.sflag [#allocation3], 1
    %2990 = vsyncpa %s2989, 1

</llo_original>
